<compile_context>
chip_gen: v5e
topology: v5e:2x2
jax: 0.10.0
libtpu: 0.0.40
codegen_flags: <defaults>
</compile_context>

<pallas_src>
import functools

import jax
import jax.numpy as jnp
from jax.experimental import pallas as pl
from jax.experimental.pallas import tpu as pltpu

EPS = 1e-5
LANE = 128
SUBLANE = 16            # bf16-friendly batch-tile granularity
MAX_TB = 512            # batch-tile cap (fills the 2x256 MXU on v6e/v7x)
MAX_UNROLL_BLOCKS = 6   # above this, the resident kernel uses lax.fori_loop


def _round_up(n, m):
    return ((n + m - 1) // m) * m


def _cdiv(a, b):
    return (a + b - 1) // b


def _pad_to(a, shape):
    return jnp.pad(a, [(0, t - s) for s, t in zip(a.shape, shape)])


def _vmem_capacity_bytes():
    try:
        return int(pltpu.get_tpu_info().vmem_capacity_bytes)
    except Exception:
        return 64 << 20  # assume the most restrictive generation (v7x: 64 MiB/TC)


# ---------------------------------------------------------------------------
# Kernels
# ---------------------------------------------------------------------------
def _resident_kernel(n_blocks, unroll,
                     x_ref, wf_ref, bf_ref,
                     w1_ref, b1_ref, w2_ref, b2_ref,
                     hs_ref, hh_ref, wh_ref, bh_ref,
                     o_ref):
    """All block weights VMEM-resident; block loop runs inside the kernel."""
    # first_layer: Linear(d_in, d_main)   (x already bf16 from the wrapper)
    h = jnp.dot(x_ref[...], wf_ref[...],
                preferred_element_type=jnp.float32) + bf_ref[...]

    # residual blocks (BN folded into w1/b1; dropout = identity)
    def block_step(blk, h):
        z = jnp.dot(h.astype(jnp.bfloat16), w1_ref[blk],
                    preferred_element_type=jnp.float32) + b1_ref[blk]
        z = jnp.maximum(z, 0.0)                                   # ReLU
        z = jnp.dot(z.astype(jnp.bfloat16), w2_ref[blk],
                    preferred_element_type=jnp.float32) + b2_ref[blk]
        return h + z                                              # skip (f32)

    if unroll:                                   # small n_blocks: static unroll
        for blk in range(n_blocks):
            h = block_step(blk, h)
    else:                                        # large n_blocks: visible loop
        h = jax.lax.fori_loop(0, n_blocks, block_step, h)

    # head: Norm (precomputed scale/shift) -> ReLU -> Linear
    y = jnp.maximum(h * hs_ref[...] + hh_ref[...], 0.0)
    out = jnp.dot(y.astype(jnp.bfloat16), wh_ref[...],
                  preferred_element_type=jnp.float32) + bh_ref[...]
    o_ref[...] = out.astype(o_ref.dtype)


def _streaming_kernel(x_ref, wf_ref, bf_ref,
                      w1_ref, b1_ref, w2_ref, b2_ref,
                      hs_ref, hh_ref, wh_ref, bh_ref,
                      o_ref, h_ref):
    """One residual block per grid step; (w1, w2) streamed (double-buffered by
    Pallas); running activation h carried in a VMEM scratch across blocks."""
    blk = pl.program_id(1)

    @pl.when(blk == 0)
    def _():
        h_ref[...] = jnp.dot(x_ref[...], wf_ref[...],
                             preferred_element_type=jnp.float32) + bf_ref[...]

    h = h_ref[...]
    z = jnp.dot(h.astype(jnp.bfloat16), w1_ref[...],
                preferred_element_type=jnp.float32) + b1_ref[...]
    z = jnp.maximum(z, 0.0)
    z = jnp.dot(z.astype(jnp.bfloat16), w2_ref[...],
                preferred_element_type=jnp.float32) + b2_ref[...]
    h = h + z
    h_ref[...] = h

    @pl.when(blk == pl.num_programs(1) - 1)
    def _():
        y = jnp.maximum(h * hs_ref[...] + hh_ref[...], 0.0)
        o_ref[...] = (jnp.dot(y.astype(jnp.bfloat16), wh_ref[...],
                              preferred_element_type=jnp.float32)
                      + bh_ref[...]).astype(o_ref.dtype)


# ---------------------------------------------------------------------------
# Parameter preparation: fold BN, pad to lane-dense shapes, cast weights to bf16
# ---------------------------------------------------------------------------
def _prepare_params(params, n_blocks):
    d_in, d_main = params["w_first"].shape
    d_hidden = params["w1"].shape[2]
    d_out = params["w_head"].shape[1]
    dmp = _round_up(d_main, LANE)
    dhp = _round_up(d_hidden, LANE)
    dop = _round_up(d_out, LANE)

    # Fold per-block BatchNorm (eval stats) into linear_first:
    #   ((h - mean) * rsqrt(var+eps) * gamma + beta) @ w1 + b1
    #     = h @ (scale[:, None] * w1) + (shift @ w1 + b1)
    scale = params["bn_gamma"] * jax.lax.rsqrt(params["bn_var"] + EPS)   # (n,1,dm)
    shift = params["bn_beta"] - params["bn_mean"] * scale                # (n,1,dm)
    w1_f = jnp.swapaxes(scale, -1, -2) * params["w1"]                    # (n,dm,dh)
    b1_f = jnp.matmul(shift, params["w1"]) + params["b1"]                # (n,1,dh)

    # Head BN cannot fold through the ReLU -> precomputed scale/shift.
    hscale = params["head_gamma"] * jax.lax.rsqrt(params["head_var"] + EPS)
    hshift = params["head_beta"] - params["head_mean"] * hscale

    prep = dict(
        w_first=_pad_to(params["w_first"], (d_in, dmp)).astype(jnp.bfloat16),
        b_first=_pad_to(params["b_first"], (1, dmp)),
        w1=_pad_to(w1_f, (n_blocks, dmp, dhp)).astype(jnp.bfloat16),
        b1=_pad_to(b1_f, (n_blocks, 1, dhp)),
        w2=_pad_to(params["w2"], (n_blocks, dhp, dmp)).astype(jnp.bfloat16),
        b2=_pad_to(params["b2"], (n_blocks, 1, dmp)),
        hscale=_pad_to(hscale, (1, dmp)),
        hshift=_pad_to(hshift, (1, dmp)),
        w_head=_pad_to(params["w_head"], (dmp, dop)).astype(jnp.bfloat16),
        b_head=_pad_to(params["b_head"], (1, dop)),
    )
    return prep, (dmp, dhp, dop, d_out)


# ---------------------------------------------------------------------------
# Wrapper
# ---------------------------------------------------------------------------
def resnet_forward(params, x, *, n_blocks, force_stream=False,
                   max_unroll_blocks=MAX_UNROLL_BLOCKS):
    B, d_in = x.shape
    prep, (dmp, dhp, dop, d_out) = _prepare_params(params, n_blocks)

    # ---- batch tile: minimise padding, >=2 tiles when possible (v7x: 2 TCs),
    #      cap at MAX_TB to bound per-step activation VMEM.
    n_tiles_target = max(_cdiv(B, MAX_TB), 2 if B >= 2 * SUBLANE else 1)
    TB = _round_up(_cdiv(B, n_tiles_target), SUBLANE)
    B_pad = _round_up(B, TB)
    n_tiles = B_pad // TB

    # pre-pad + pre-cast activations to bf16 (halves per-tile HBM traffic)
    x_pad = _pad_to(x, (B_pad, d_in)).astype(jnp.bfloat16)

    weights = (prep["w_first"], prep["b_first"],
               prep["w1"], prep["b1"], prep["w2"], prep["b2"],
               prep["hscale"], prep["hshift"], prep["w_head"], prep["b_head"])

    # ---- VMEM accounting -> path selection + explicit vmem_limit_bytes
    weight_bytes = sum(int(a.size) * a.dtype.itemsize for a in weights)
    blk_weight_bytes = sum(int(prep[k].size) * prep[k].dtype.itemsize
                           for k in ("w1", "b1", "w2", "b2"))
    const_weight_bytes = weight_bytes - blk_weight_bytes
    tile_bytes = 2 * TB * d_in * 2 + 2 * TB * dop * 4        # dbl-buffered x / out
    act_bytes = TB * (2 * dmp + dhp) * 4                     # h / z intermediates
    resident_bytes = weight_bytes + tile_bytes + act_bytes
    per_block_bytes = blk_weight_bytes // max(n_blocks, 1)
    stream_bytes = (const_weight_bytes + 2 * per_block_bytes  # dbl-buffered (w1,w2)
                    + TB * dmp * 4 + tile_bytes + act_bytes)  # + h scratch

    vmem_cap = _vmem_capacity_bytes()
    use_stream = force_stream or (resident_bytes > 0.7 * vmem_cap)

    flops = 2 * B_pad * (d_in * dmp + n_blocks * 2 * dmp * dhp + dmp * dop)
    io_bytes = int(x_pad.size) * 2 + B_pad * dop * 4

    def call(single_buffer_weights):
        # Constant-index weight specs: DMA'd once; Buffered(1) drops the default
        # second buffer (halves weight VMEM).  None => default buffering.
        wmode = pl.Buffered(1) if single_buffer_weights else None
        extra = 0 if single_buffer_weights else weight_bytes

        if not use_stream:
            def wspec(a):
                return pl.BlockSpec(a.shape, lambda i, _nd=a.ndim: (0,) * _nd,
                                    pipeline_mode=wmode)
            in_specs = [pl.BlockSpec((TB, d_in), lambda i: (i, 0))]
            in_specs += [wspec(a) for a in weights]
            out_spec = pl.BlockSpec((TB, dop), lambda i: (i, 0))
            grid = (n_tiles,)
            dims = ("parallel",)
            kernel = functools.partial(_resident_kernel, n_blocks,
                                       n_blocks <= max_unroll_blocks)
            scratch = []
            vmem_need = resident_bytes + extra
            bytes_accessed = io_bytes + weight_bytes
        else:
            def wspec(a):
                return pl.BlockSpec(a.shape, lambda i, b, _nd=a.ndim: (0,) * _nd,
                                    pipeline_mode=wmode)
            blkmap = lambda i, b: (b, 0, 0)
            in_specs = [pl.BlockSpec((TB, d_in), lambda i, b: (i, 0)),
                        wspec(prep["w_first"]), wspec(prep["b_first"]),
                        pl.BlockSpec((None, dmp, dhp), blkmap),   # w1[blk]
                        pl.BlockSpec((None, 1, dhp), blkmap),     # b1[blk]
                        pl.BlockSpec((None, dhp, dmp), blkmap),   # w2[blk]
                        pl.BlockSpec((None, 1, dmp), blkmap),     # b2[blk]
                        wspec(prep["hscale"]), wspec(prep["hshift"]),
                        wspec(prep["w_head"]), wspec(prep["b_head"])]
            out_spec = pl.BlockSpec((TB, dop), lambda i, b: (i, 0))
            grid = (n_tiles, n_blocks)
            dims = ("parallel", "arbitrary")
            kernel = _streaming_kernel
            scratch = [pltpu.VMEM((TB, dmp), jnp.float32)]        # running h
            vmem_need = stream_bytes + (0 if single_buffer_weights
                                        else const_weight_bytes)
            # streaming re-reads the block weights once per batch tile
            bytes_accessed = (io_bytes + const_weight_bytes
                              + n_tiles * blk_weight_bytes)

        vmem_limit = min(vmem_cap, max(32 << 20, int(1.25 * vmem_need)))
        return pl.pallas_call(
            kernel,
            out_shape=jax.ShapeDtypeStruct((B_pad, dop), jnp.float32),
            grid=grid,
            in_specs=in_specs,
            out_specs=out_spec,
            scratch_shapes=scratch,
            compiler_params=pltpu.CompilerParams(
                dimension_semantics=dims,
                vmem_limit_bytes=int(vmem_limit)),
            cost_estimate=pl.CostEstimate(
                flops=int(flops), transcendentals=0,
                bytes_accessed=int(bytes_accessed)),
        )(x_pad, *weights)

    try:
        out_pad = call(single_buffer_weights=True)
    except Exception:
        # TODO(synk): pl.Buffered(1) single-buffering unavailable on this jax
        # version; fall back to default double-buffered weight specs.
        out_pad = call(single_buffer_weights=False)

    return out_pad[:B, :d_out]


# ---------------------------------------------------------------------------
# Init + pure-JAX reference (unpadded, unfolded params)
# ---------------------------------------------------------------------------
def init_params(key, *, d_in, d_main, d_hidden, d_out, n_blocks):
    """Deterministic parameter init (PyTorch-Linear-style uniform ranges)."""
    ks = jax.random.split(key, 16)

    def lin(k, fan_in, shape):
        bound = 1.0 / jnp.sqrt(float(fan_in))
        return jax.random.uniform(k, shape, jnp.float32, -bound, bound)

    return {
        "w_first": lin(ks[0], d_in, (d_in, d_main)),
        "b_first": lin(ks[1], d_in, (1, d_main)),
        "bn_gamma": jnp.ones((n_blocks, 1, d_main), jnp.float32)
                    + 0.05 * jax.random.normal(ks[2], (n_blocks, 1, d_main)),
        "bn_beta": 0.05 * jax.random.normal(ks[3], (n_blocks, 1, d_main)),
        "bn_mean": 0.10 * jax.random.normal(ks[4], (n_blocks, 1, d_main)),
        "bn_var": jnp.ones((n_blocks, 1, d_main), jnp.float32)
                  + 0.10 * jax.random.uniform(ks[5], (n_blocks, 1, d_main)),
        "w1": lin(ks[6], d_main, (n_blocks, d_main, d_hidden)),
        "b1": lin(ks[7], d_main, (n_blocks, 1, d_hidden)),
        "w2": lin(ks[8], d_hidden, (n_blocks, d_hidden, d_main)),
        "b2": lin(ks[9], d_hidden, (n_blocks, 1, d_main)),
        "head_gamma": jnp.ones((1, d_main), jnp.float32)
                      + 0.05 * jax.random.normal(ks[10], (1, d_main)),
        "head_beta": 0.05 * jax.random.normal(ks[11], (1, d_main)),
        "head_mean": 0.10 * jax.random.normal(ks[12], (1, d_main)),
        "head_var": jnp.ones((1, d_main), jnp.float32)
                    + 0.10 * jax.random.uniform(ks[13], (1, d_main)),
        "w_head": lin(ks[14], d_main, (d_main, d_out)),
        "b_head": lin(ks[15], d_main, (1, d_out)),
    }


def resnet_reference(params, x, *, n_blocks):
    """Pure-JAX reference (f32, unfolded BN) for correctness check."""
    h = x @ params["w_first"] + params["b_first"]
    for i in range(n_blocks):
        z = (h - params["bn_mean"][i]) / jnp.sqrt(params["bn_var"][i] + EPS)
        z = z * params["bn_gamma"][i] + params["bn_beta"][i]
        z = jnp.maximum(z @ params["w1"][i] + params["b1"][i], 0.0)
        z = z @ params["w2"][i] + params["b2"][i]
        h = h + z
    y = (h - params["head_mean"]) / jnp.sqrt(params["head_var"] + EPS)
    y = y * params["head_gamma"] + params["head_beta"]
    y = jnp.maximum(y, 0.0)
    return y @ params["w_head"] + params["b_head"]


if __name__ == "__main__":
    # Small shapes consistent with the module's forward (tabular data).
    B, D_IN, D_MAIN, D_HIDDEN, D_OUT, N_BLOCKS = 8, 8, 32, 64, 4, 2

    key = jax.random.PRNGKey(0)
    k_x, k_p = jax.random.split(key)
    x = jax.random.normal(k_x, (B, D_IN), jnp.float32)
    params = init_params(k_p, d_in=D_IN, d_main=D_MAIN, d_hidden=D_HIDDEN,
                         d_out=D_OUT, n_blocks=N_BLOCKS)

    ref = resnet_reference(params, x, n_blocks=N_BLOCKS)
    # bf16 matmul operands (f32 accumulation) -> loosened tolerance vs f32 ref.
    tol = dict(atol=5e-2, rtol=5e-2)

    # 1) default path: weights-resident, statically unrolled block loop.
    out = jax.block_until_ready(resnet_forward(params, x, n_blocks=N_BLOCKS))
    assert out.shape == (B, D_OUT)
    assert jnp.allclose(out, ref, **tol), "resident path mismatch vs reference"

    # 2) per-block weight-streaming path (auto-selected for large configs / v7x).
    out_s = jax.block_until_ready(
        resnet_forward(params, x, n_blocks=N_BLOCKS, force_stream=True))
    assert jnp.allclose(out_s, ref, **tol), "streaming path mismatch vs reference"

    # 3) fori_loop block loop (auto-selected when n_blocks > MAX_UNROLL_BLOCKS).
    out_f = jax.block_until_ready(
        resnet_forward(params, x, n_blocks=N_BLOCKS, max_unroll_blocks=0))
    assert jnp.allclose(out_f, ref, **tol), "fori-loop path mismatch vs reference"

    print("KERNEL_OK")
</pallas_src>

<mosaic_0001>
module attributes {stable_mosaic.version = 11 : i64} {
  func.func @_resident_kernel(%arg0: i32, %arg1: memref<16x8xbf16, #tpu.memory_space<vmem>>, %arg2: memref<8x128xbf16, #tpu.memory_space<vmem>>, %arg3: memref<1x128xf32, #tpu.memory_space<vmem>>, %arg4: memref<2x128x128xbf16, #tpu.memory_space<vmem>>, %arg5: memref<2x1x128xf32, #tpu.memory_space<vmem>>, %arg6: memref<2x128x128xbf16, #tpu.memory_space<vmem>>, %arg7: memref<2x1x128xf32, #tpu.memory_space<vmem>>, %arg8: memref<1x128xf32, #tpu.memory_space<vmem>>, %arg9: memref<1x128xf32, #tpu.memory_space<vmem>>, %arg10: memref<128x128xbf16, #tpu.memory_space<vmem>>, %arg11: memref<1x128xf32, #tpu.memory_space<vmem>>, %arg12: memref<16x128xf32, #tpu.memory_space<vmem>>) attributes {dimension_semantics = [#tpu.dimension_semantics<parallel>], iteration_bounds = array<i64: 1>, scalar_prefetch = 0 : i64, scratch_operands = 0 : i64, tpu.core_type = #tpu.core_type<tc>, window_params = [{transform_indices = @transform_0, window_bounds = array<i64: 16, 8>}, {pipeline_mode = #tpu.pipeline_mode<synchronous>, transform_indices = @transform_1, window_bounds = array<i64: 8, 128>}, {pipeline_mode = #tpu.pipeline_mode<synchronous>, transform_indices = @transform_2, window_bounds = array<i64: 1, 128>}, {pipeline_mode = #tpu.pipeline_mode<synchronous>, transform_indices = @transform_3, window_bounds = array<i64: 2, 128, 128>}, {pipeline_mode = #tpu.pipeline_mode<synchronous>, transform_indices = @transform_4, window_bounds = array<i64: 2, 1, 128>}, {pipeline_mode = #tpu.pipeline_mode<synchronous>, transform_indices = @transform_5, window_bounds = array<i64: 2, 128, 128>}, {pipeline_mode = #tpu.pipeline_mode<synchronous>, transform_indices = @transform_6, window_bounds = array<i64: 2, 1, 128>}, {pipeline_mode = #tpu.pipeline_mode<synchronous>, transform_indices = @transform_7, window_bounds = array<i64: 1, 128>}, {pipeline_mode = #tpu.pipeline_mode<synchronous>, transform_indices = @transform_8, window_bounds = array<i64: 1, 128>}, {pipeline_mode = #tpu.pipeline_mode<synchronous>, transform_indices = @transform_9, window_bounds = array<i64: 128, 128>}, {pipeline_mode = #tpu.pipeline_mode<synchronous>, transform_indices = @transform_10, window_bounds = array<i64: 1, 128>}, {transform_indices = @transform_11, window_bounds = array<i64: 16, 128>}]} {
    %c0 = arith.constant 0 : index
    %c0_0 = arith.constant 0 : index
    %0 = vector.load %arg1[%c0, %c0_0] : memref<16x8xbf16, #tpu.memory_space<vmem>>, vector<16x8xbf16>
    %c0_1 = arith.constant 0 : index
    %c0_2 = arith.constant 0 : index
    %1 = vector.load %arg2[%c0_1, %c0_2] : memref<8x128xbf16, #tpu.memory_space<vmem>>, vector<8x128xbf16>
    %cst = arith.constant dense<0.000000e+00> : vector<16x128xf32>
    %2 = tpu.matmul %0, %1, %cst {dimension_numbers = #tpu.dot_dimension_numbers<[1], [0], [0], [1], [0, 0, 1, 1], [], []>} : vector<16x8xbf16>, vector<8x128xbf16>, vector<16x128xf32> -> vector<16x128xf32>
    %c0_3 = arith.constant 0 : index
    %c0_4 = arith.constant 0 : index
    %3 = vector.load %arg3[%c0_3, %c0_4] : memref<1x128xf32, #tpu.memory_space<vmem>>, vector<1x128xf32>
    %4 = vector.broadcast %3 : vector<1x128xf32> to vector<16x128xf32>
    %5 = arith.addf %2, %4 : vector<16x128xf32>
    %6 = arith.truncf %5 : vector<16x128xf32> to vector<16x128xbf16>
    %c0_5 = arith.constant 0 : index
    %c0_6 = arith.constant 0 : index
    %c0_7 = arith.constant 0 : index
    %7 = vector.load %arg4[%c0_5, %c0_6, %c0_7] : memref<2x128x128xbf16, #tpu.memory_space<vmem>>, vector<1x128x128xbf16>
    %8 = vector.shape_cast %7 : vector<1x128x128xbf16> to vector<128x128xbf16>
    %cst_8 = arith.constant dense<0.000000e+00> : vector<16x128xf32>
    %9 = tpu.matmul %6, %8, %cst_8 {dimension_numbers = #tpu.dot_dimension_numbers<[1], [0], [0], [1], [0, 0, 1, 1], [], []>} : vector<16x128xbf16>, vector<128x128xbf16>, vector<16x128xf32> -> vector<16x128xf32>
    %c0_9 = arith.constant 0 : index
    %c0_10 = arith.constant 0 : index
    %c0_11 = arith.constant 0 : index
    %10 = vector.load %arg5[%c0_9, %c0_10, %c0_11] : memref<2x1x128xf32, #tpu.memory_space<vmem>>, vector<1x1x128xf32>
    %11 = vector.shape_cast %10 : vector<1x1x128xf32> to vector<1x128xf32>
    %12 = vector.broadcast %11 : vector<1x128xf32> to vector<16x128xf32>
    %13 = arith.addf %9, %12 : vector<16x128xf32>
    %cst_12 = arith.constant 0.000000e+00 : f32
    %14 = vector.broadcast %cst_12 : f32 to vector<16x128xf32>
    %15 = arith.maximumf %13, %14 : vector<16x128xf32>
    %16 = arith.truncf %15 : vector<16x128xf32> to vector<16x128xbf16>
    %c0_13 = arith.constant 0 : index
    %c0_14 = arith.constant 0 : index
    %c0_15 = arith.constant 0 : index
    %17 = vector.load %arg6[%c0_13, %c0_14, %c0_15] : memref<2x128x128xbf16, #tpu.memory_space<vmem>>, vector<1x128x128xbf16>
    %18 = vector.shape_cast %17 : vector<1x128x128xbf16> to vector<128x128xbf16>
    %cst_16 = arith.constant dense<0.000000e+00> : vector<16x128xf32>
    %19 = tpu.matmul %16, %18, %cst_16 {dimension_numbers = #tpu.dot_dimension_numbers<[1], [0], [0], [1], [0, 0, 1, 1], [], []>} : vector<16x128xbf16>, vector<128x128xbf16>, vector<16x128xf32> -> vector<16x128xf32>
    %c0_17 = arith.constant 0 : index
    %c0_18 = arith.constant 0 : index
    %c0_19 = arith.constant 0 : index
    %20 = vector.load %arg7[%c0_17, %c0_18, %c0_19] : memref<2x1x128xf32, #tpu.memory_space<vmem>>, vector<1x1x128xf32>
    %21 = vector.shape_cast %20 : vector<1x1x128xf32> to vector<1x128xf32>
    %22 = vector.broadcast %21 : vector<1x128xf32> to vector<16x128xf32>
    %23 = arith.addf %19, %22 : vector<16x128xf32>
    %24 = arith.addf %5, %23 : vector<16x128xf32>
    %25 = arith.truncf %24 : vector<16x128xf32> to vector<16x128xbf16>
    %c1 = arith.constant 1 : index
    %c0_20 = arith.constant 0 : index
    %c0_21 = arith.constant 0 : index
    %26 = vector.load %arg4[%c1, %c0_20, %c0_21] : memref<2x128x128xbf16, #tpu.memory_space<vmem>>, vector<1x128x128xbf16>
    %27 = vector.shape_cast %26 : vector<1x128x128xbf16> to vector<128x128xbf16>
    %cst_22 = arith.constant dense<0.000000e+00> : vector<16x128xf32>
    %28 = tpu.matmul %25, %27, %cst_22 {dimension_numbers = #tpu.dot_dimension_numbers<[1], [0], [0], [1], [0, 0, 1, 1], [], []>} : vector<16x128xbf16>, vector<128x128xbf16>, vector<16x128xf32> -> vector<16x128xf32>
    %c1_23 = arith.constant 1 : index
    %c0_24 = arith.constant 0 : index
    %c0_25 = arith.constant 0 : index
    %29 = vector.load %arg5[%c1_23, %c0_24, %c0_25] : memref<2x1x128xf32, #tpu.memory_space<vmem>>, vector<1x1x128xf32>
    %30 = vector.shape_cast %29 : vector<1x1x128xf32> to vector<1x128xf32>
    %31 = vector.broadcast %30 : vector<1x128xf32> to vector<16x128xf32>
    %32 = arith.addf %28, %31 : vector<16x128xf32>
    %cst_26 = arith.constant 0.000000e+00 : f32
    %33 = vector.broadcast %cst_26 : f32 to vector<16x128xf32>
    %34 = arith.maximumf %32, %33 : vector<16x128xf32>
    %35 = arith.truncf %34 : vector<16x128xf32> to vector<16x128xbf16>
    %c1_27 = arith.constant 1 : index
    %c0_28 = arith.constant 0 : index
    %c0_29 = arith.constant 0 : index
    %36 = vector.load %arg6[%c1_27, %c0_28, %c0_29] : memref<2x128x128xbf16, #tpu.memory_space<vmem>>, vector<1x128x128xbf16>
    %37 = vector.shape_cast %36 : vector<1x128x128xbf16> to vector<128x128xbf16>
    %cst_30 = arith.constant dense<0.000000e+00> : vector<16x128xf32>
    %38 = tpu.matmul %35, %37, %cst_30 {dimension_numbers = #tpu.dot_dimension_numbers<[1], [0], [0], [1], [0, 0, 1, 1], [], []>} : vector<16x128xbf16>, vector<128x128xbf16>, vector<16x128xf32> -> vector<16x128xf32>
    %c1_31 = arith.constant 1 : index
    %c0_32 = arith.constant 0 : index
    %c0_33 = arith.constant 0 : index
    %39 = vector.load %arg7[%c1_31, %c0_32, %c0_33] : memref<2x1x128xf32, #tpu.memory_space<vmem>>, vector<1x1x128xf32>
    %40 = vector.shape_cast %39 : vector<1x1x128xf32> to vector<1x128xf32>
    %41 = vector.broadcast %40 : vector<1x128xf32> to vector<16x128xf32>
    %42 = arith.addf %38, %41 : vector<16x128xf32>
    %43 = arith.addf %24, %42 : vector<16x128xf32>
    %c0_34 = arith.constant 0 : index
    %c0_35 = arith.constant 0 : index
    %44 = vector.load %arg8[%c0_34, %c0_35] : memref<1x128xf32, #tpu.memory_space<vmem>>, vector<1x128xf32>
    %45 = vector.broadcast %44 : vector<1x128xf32> to vector<16x128xf32>
    %46 = arith.mulf %43, %45 : vector<16x128xf32>
    %c0_36 = arith.constant 0 : index
    %c0_37 = arith.constant 0 : index
    %47 = vector.load %arg9[%c0_36, %c0_37] : memref<1x128xf32, #tpu.memory_space<vmem>>, vector<1x128xf32>
    %48 = vector.broadcast %47 : vector<1x128xf32> to vector<16x128xf32>
    %49 = arith.addf %46, %48 : vector<16x128xf32>
    %cst_38 = arith.constant 0.000000e+00 : f32
    %50 = vector.broadcast %cst_38 : f32 to vector<16x128xf32>
    %51 = arith.maximumf %49, %50 : vector<16x128xf32>
    %52 = arith.truncf %51 : vector<16x128xf32> to vector<16x128xbf16>
    %c0_39 = arith.constant 0 : index
    %c0_40 = arith.constant 0 : index
    %53 = vector.load %arg10[%c0_39, %c0_40] : memref<128x128xbf16, #tpu.memory_space<vmem>>, vector<128x128xbf16>
    %cst_41 = arith.constant dense<0.000000e+00> : vector<16x128xf32>
    %54 = tpu.matmul %52, %53, %cst_41 {dimension_numbers = #tpu.dot_dimension_numbers<[1], [0], [0], [1], [0, 0, 1, 1], [], []>} : vector<16x128xbf16>, vector<128x128xbf16>, vector<16x128xf32> -> vector<16x128xf32>
    %c0_42 = arith.constant 0 : index
    %c0_43 = arith.constant 0 : index
    %55 = vector.load %arg11[%c0_42, %c0_43] : memref<1x128xf32, #tpu.memory_space<vmem>>, vector<1x128xf32>
    %56 = vector.broadcast %55 : vector<1x128xf32> to vector<16x128xf32>
    %57 = arith.addf %54, %56 : vector<16x128xf32>
    %c0_44 = arith.constant 0 : index
    %c0_45 = arith.constant 0 : index
    %58 = vector.load %arg12[%c0_44, %c0_45] : memref<16x128xf32, #tpu.memory_space<vmem>>, vector<16x128xf32>
    tpu.vector_store %arg12[%c0_44, %c0_45], %57 {strides = array<i32>} : memref<16x128xf32, #tpu.memory_space<vmem>>, vector<16x128xf32>,
    return
  }
  func.func @transform_0(%arg0: i32) -> (i32, i32) {
    %c0_i32 = arith.constant 0 : i32
    %c0_i32_0 = arith.constant 0 : i32
    return %arg0, %c0_i32 : i32, i32
  }
  func.func @transform_1(%arg0: i32) -> (i32, i32) {
    %c0_i32 = arith.constant 0 : i32
    %c0_i32_0 = arith.constant 0 : i32
    %c0_i32_1 = arith.constant 0 : i32
    return %c0_i32, %c0_i32_0 : i32, i32
  }
  func.func @transform_2(%arg0: i32) -> (i32, i32) {
    %c0_i32 = arith.constant 0 : i32
    %c0_i32_0 = arith.constant 0 : i32
    %c0_i32_1 = arith.constant 0 : i32
    return %c0_i32, %c0_i32_0 : i32, i32
  }
  func.func @transform_3(%arg0: i32) -> (i32, i32, i32) {
    %c0_i32 = arith.constant 0 : i32
    %c0_i32_0 = arith.constant 0 : i32
    %c0_i32_1 = arith.constant 0 : i32
    %c0_i32_2 = arith.constant 0 : i32
    return %c0_i32, %c0_i32_0, %c0_i32_1 : i32, i32, i32
  }
  func.func @transform_4(%arg0: i32) -> (i32, i32, i32) {
    %c0_i32 = arith.constant 0 : i32
    %c0_i32_0 = arith.constant 0 : i32
    %c0_i32_1 = arith.constant 0 : i32
    %c0_i32_2 = arith.constant 0 : i32
    return %c0_i32, %c0_i32_0, %c0_i32_1 : i32, i32, i32
  }
  func.func @transform_5(%arg0: i32) -> (i32, i32, i32) {
    %c0_i32 = arith.constant 0 : i32
    %c0_i32_0 = arith.constant 0 : i32
    %c0_i32_1 = arith.constant 0 : i32
    %c0_i32_2 = arith.constant 0 : i32
    return %c0_i32, %c0_i32_0, %c0_i32_1 : i32, i32, i32
  }
  func.func @transform_6(%arg0: i32) -> (i32, i32, i32) {
    %c0_i32 = arith.constant 0 : i32
    %c0_i32_0 = arith.constant 0 : i32
    %c0_i32_1 = arith.constant 0 : i32
    %c0_i32_2 = arith.constant 0 : i32
    return %c0_i32, %c0_i32_0, %c0_i32_1 : i32, i32, i32
  }
  func.func @transform_7(%arg0: i32) -> (i32, i32) {
    %c0_i32 = arith.constant 0 : i32
    %c0_i32_0 = arith.constant 0 : i32
    %c0_i32_1 = arith.constant 0 : i32
    return %c0_i32, %c0_i32_0 : i32, i32
  }
  func.func @transform_8(%arg0: i32) -> (i32, i32) {
    %c0_i32 = arith.constant 0 : i32
    %c0_i32_0 = arith.constant 0 : i32
    %c0_i32_1 = arith.constant 0 : i32
    return %c0_i32, %c0_i32_0 : i32, i32
  }
  func.func @transform_9(%arg0: i32) -> (i32, i32) {
    %c0_i32 = arith.constant 0 : i32
    %c0_i32_0 = arith.constant 0 : i32
    %c0_i32_1 = arith.constant 0 : i32
    return %c0_i32, %c0_i32_0 : i32, i32
  }
  func.func @transform_10(%arg0: i32) -> (i32, i32) {
    %c0_i32 = arith.constant 0 : i32
    %c0_i32_0 = arith.constant 0 : i32
    %c0_i32_1 = arith.constant 0 : i32
    return %c0_i32, %c0_i32_0 : i32, i32
  }
  func.func @transform_11(%arg0: i32) -> (i32, i32) {
    %c0_i32 = arith.constant 0 : i32
    %c0_i32_0 = arith.constant 0 : i32
    return %arg0, %c0_i32 : i32, i32
  }
}

module attributes {stable_mosaic.version = 11 : i64} {
  func.func @_resident_kernel(%arg0: i32, %arg1: memref<16x8xbf16, #tpu.memory_space<vmem>>, %arg2: memref<8x128xbf16, #tpu.memory_space<vmem>>, %arg3: memref<1x128xf32, #tpu.memory_space<vmem>>, %arg4: memref<2x128x128xbf16, #tpu.memory_space<vmem>>, %arg5: memref<2x1x128xf32, #tpu.memory_space<vmem>>, %arg6: memref<2x128x128xbf16, #tpu.memory_space<vmem>>, %arg7: memref<2x1x128xf32, #tpu.memory_space<vmem>>, %arg8: memref<1x128xf32, #tpu.memory_space<vmem>>, %arg9: memref<1x128xf32, #tpu.memory_space<vmem>>, %arg10: memref<128x128xbf16, #tpu.memory_space<vmem>>, %arg11: memref<1x128xf32, #tpu.memory_space<vmem>>, %arg12: memref<16x128xf32, #tpu.memory_space<vmem>>) attributes {dimension_semantics = [#tpu.dimension_semantics<parallel>], iteration_bounds = array<i64: 1>, scalar_prefetch = 0 : i64, scratch_operands = 0 : i64, tpu.core_type = #tpu.core_type<tc>, window_params = [{transform_indices = @transform_0, window_bounds = array<i64: 16, 8>}, {pipeline_mode = #tpu.pipeline_mode<synchronous>, transform_indices = @transform_1, window_bounds = array<i64: 8, 128>}, {pipeline_mode = #tpu.pipeline_mode<synchronous>, transform_indices = @transform_2, window_bounds = array<i64: 1, 128>}, {pipeline_mode = #tpu.pipeline_mode<synchronous>, transform_indices = @transform_3, window_bounds = array<i64: 2, 128, 128>}, {pipeline_mode = #tpu.pipeline_mode<synchronous>, transform_indices = @transform_4, window_bounds = array<i64: 2, 1, 128>}, {pipeline_mode = #tpu.pipeline_mode<synchronous>, transform_indices = @transform_5, window_bounds = array<i64: 2, 128, 128>}, {pipeline_mode = #tpu.pipeline_mode<synchronous>, transform_indices = @transform_6, window_bounds = array<i64: 2, 1, 128>}, {pipeline_mode = #tpu.pipeline_mode<synchronous>, transform_indices = @transform_7, window_bounds = array<i64: 1, 128>}, {pipeline_mode = #tpu.pipeline_mode<synchronous>, transform_indices = @transform_8, window_bounds = array<i64: 1, 128>}, {pipeline_mode = #tpu.pipeline_mode<synchronous>, transform_indices = @transform_9, window_bounds = array<i64: 128, 128>}, {pipeline_mode = #tpu.pipeline_mode<synchronous>, transform_indices = @transform_10, window_bounds = array<i64: 1, 128>}, {transform_indices = @transform_11, window_bounds = array<i64: 16, 128>}]} {
    %c0 = arith.constant 0 : index
    %c0_0 = arith.constant 0 : index
    %0 = vector.load %arg1[%c0, %c0_0] : memref<16x8xbf16, #tpu.memory_space<vmem>>, vector<16x8xbf16>
    %c0_1 = arith.constant 0 : index
    %c0_2 = arith.constant 0 : index
    %1 = vector.load %arg2[%c0_1, %c0_2] : memref<8x128xbf16, #tpu.memory_space<vmem>>, vector<8x128xbf16>
    %cst = arith.constant dense<0.000000e+00> : vector<16x128xf32>
    %2 = tpu.matmul %0, %1, %cst {dimension_numbers = #tpu.dot_dimension_numbers<[1], [0], [0], [1], [0, 0, 1, 1], [], []>} : vector<16x8xbf16>, vector<8x128xbf16>, vector<16x128xf32> -> vector<16x128xf32>
    %c0_3 = arith.constant 0 : index
    %c0_4 = arith.constant 0 : index
    %3 = vector.load %arg3[%c0_3, %c0_4] : memref<1x128xf32, #tpu.memory_space<vmem>>, vector<1x128xf32>
    %4 = vector.broadcast %3 : vector<1x128xf32> to vector<16x128xf32>
    %5 = arith.addf %2, %4 : vector<16x128xf32>
    %6 = arith.truncf %5 : vector<16x128xf32> to vector<16x128xbf16>
    %c0_5 = arith.constant 0 : index
    %c0_6 = arith.constant 0 : index
    %c0_7 = arith.constant 0 : index
    %7 = vector.load %arg4[%c0_5, %c0_6, %c0_7] : memref<2x128x128xbf16, #tpu.memory_space<vmem>>, vector<1x128x128xbf16>
    %8 = vector.shape_cast %7 : vector<1x128x128xbf16> to vector<128x128xbf16>
    %cst_8 = arith.constant dense<0.000000e+00> : vector<16x128xf32>
    %9 = tpu.matmul %6, %8, %cst_8 {dimension_numbers = #tpu.dot_dimension_numbers<[1], [0], [0], [1], [0, 0, 1, 1], [], []>} : vector<16x128xbf16>, vector<128x128xbf16>, vector<16x128xf32> -> vector<16x128xf32>
    %c0_9 = arith.constant 0 : index
    %c0_10 = arith.constant 0 : index
    %c0_11 = arith.constant 0 : index
    %10 = vector.load %arg5[%c0_9, %c0_10, %c0_11] : memref<2x1x128xf32, #tpu.memory_space<vmem>>, vector<1x1x128xf32>
    %11 = vector.shape_cast %10 : vector<1x1x128xf32> to vector<1x128xf32>
    %12 = vector.broadcast %11 : vector<1x128xf32> to vector<16x128xf32>
    %13 = arith.addf %9, %12 : vector<16x128xf32>
    %cst_12 = arith.constant 0.000000e+00 : f32
    %14 = vector.broadcast %cst_12 : f32 to vector<16x128xf32>
    %15 = arith.maximumf %13, %14 : vector<16x128xf32>
    %16 = arith.truncf %15 : vector<16x128xf32> to vector<16x128xbf16>
    %c0_13 = arith.constant 0 : index
    %c0_14 = arith.constant 0 : index
    %c0_15 = arith.constant 0 : index
    %17 = vector.load %arg6[%c0_13, %c0_14, %c0_15] : memref<2x128x128xbf16, #tpu.memory_space<vmem>>, vector<1x128x128xbf16>
    %18 = vector.shape_cast %17 : vector<1x128x128xbf16> to vector<128x128xbf16>
    %cst_16 = arith.constant dense<0.000000e+00> : vector<16x128xf32>
    %19 = tpu.matmul %16, %18, %cst_16 {dimension_numbers = #tpu.dot_dimension_numbers<[1], [0], [0], [1], [0, 0, 1, 1], [], []>} : vector<16x128xbf16>, vector<128x128xbf16>, vector<16x128xf32> -> vector<16x128xf32>
    %c0_17 = arith.constant 0 : index
    %c0_18 = arith.constant 0 : index
    %c0_19 = arith.constant 0 : index
    %20 = vector.load %arg7[%c0_17, %c0_18, %c0_19] : memref<2x1x128xf32, #tpu.memory_space<vmem>>, vector<1x1x128xf32>
    %21 = vector.shape_cast %20 : vector<1x1x128xf32> to vector<1x128xf32>
    %22 = vector.broadcast %21 : vector<1x128xf32> to vector<16x128xf32>
    %23 = arith.addf %19, %22 : vector<16x128xf32>
    %24 = arith.addf %5, %23 : vector<16x128xf32>
    %25 = arith.truncf %24 : vector<16x128xf32> to vector<16x128xbf16>
    %c1 = arith.constant 1 : index
    %c0_20 = arith.constant 0 : index
    %c0_21 = arith.constant 0 : index
    %26 = vector.load %arg4[%c1, %c0_20, %c0_21] : memref<2x128x128xbf16, #tpu.memory_space<vmem>>, vector<1x128x128xbf16>
    %27 = vector.shape_cast %26 : vector<1x128x128xbf16> to vector<128x128xbf16>
    %cst_22 = arith.constant dense<0.000000e+00> : vector<16x128xf32>
    %28 = tpu.matmul %25, %27, %cst_22 {dimension_numbers = #tpu.dot_dimension_numbers<[1], [0], [0], [1], [0, 0, 1, 1], [], []>} : vector<16x128xbf16>, vector<128x128xbf16>, vector<16x128xf32> -> vector<16x128xf32>
    %c1_23 = arith.constant 1 : index
    %c0_24 = arith.constant 0 : index
    %c0_25 = arith.constant 0 : index
    %29 = vector.load %arg5[%c1_23, %c0_24, %c0_25] : memref<2x1x128xf32, #tpu.memory_space<vmem>>, vector<1x1x128xf32>
    %30 = vector.shape_cast %29 : vector<1x1x128xf32> to vector<1x128xf32>
    %31 = vector.broadcast %30 : vector<1x128xf32> to vector<16x128xf32>
    %32 = arith.addf %28, %31 : vector<16x128xf32>
    %cst_26 = arith.constant 0.000000e+00 : f32
    %33 = vector.broadcast %cst_26 : f32 to vector<16x128xf32>
    %34 = arith.maximumf %32, %33 : vector<16x128xf32>
    %35 = arith.truncf %34 : vector<16x128xf32> to vector<16x128xbf16>
    %c1_27 = arith.constant 1 : index
    %c0_28 = arith.constant 0 : index
    %c0_29 = arith.constant 0 : index
    %36 = vector.load %arg6[%c1_27, %c0_28, %c0_29] : memref<2x128x128xbf16, #tpu.memory_space<vmem>>, vector<1x128x128xbf16>
    %37 = vector.shape_cast %36 : vector<1x128x128xbf16> to vector<128x128xbf16>
    %cst_30 = arith.constant dense<0.000000e+00> : vector<16x128xf32>
    %38 = tpu.matmul %35, %37, %cst_30 {dimension_numbers = #tpu.dot_dimension_numbers<[1], [0], [0], [1], [0, 0, 1, 1], [], []>} : vector<16x128xbf16>, vector<128x128xbf16>, vector<16x128xf32> -> vector<16x128xf32>
    %c1_31 = arith.constant 1 : index
    %c0_32 = arith.constant 0 : index
    %c0_33 = arith.constant 0 : index
    %39 = vector.load %arg7[%c1_31, %c0_32, %c0_33] : memref<2x1x128xf32, #tpu.memory_space<vmem>>, vector<1x1x128xf32>
    %40 = vector.shape_cast %39 : vector<1x1x128xf32> to vector<1x128xf32>
    %41 = vector.broadcast %40 : vector<1x128xf32> to vector<16x128xf32>
    %42 = arith.addf %38, %41 : vector<16x128xf32>
    %43 = arith.addf %24, %42 : vector<16x128xf32>
    %c0_34 = arith.constant 0 : index
    %c0_35 = arith.constant 0 : index
    %44 = vector.load %arg8[%c0_34, %c0_35] : memref<1x128xf32, #tpu.memory_space<vmem>>, vector<1x128xf32>
    %45 = vector.broadcast %44 : vector<1x128xf32> to vector<16x128xf32>
    %46 = arith.mulf %43, %45 : vector<16x128xf32>
    %c0_36 = arith.constant 0 : index
    %c0_37 = arith.constant 0 : index
    %47 = vector.load %arg9[%c0_36, %c0_37] : memref<1x128xf32, #tpu.memory_space<vmem>>, vector<1x128xf32>
    %48 = vector.broadcast %47 : vector<1x128xf32> to vector<16x128xf32>
    %49 = arith.addf %46, %48 : vector<16x128xf32>
    %cst_38 = arith.constant 0.000000e+00 : f32
    %50 = vector.broadcast %cst_38 : f32 to vector<16x128xf32>
    %51 = arith.maximumf %49, %50 : vector<16x128xf32>
    %52 = arith.truncf %51 : vector<16x128xf32> to vector<16x128xbf16>
    %c0_39 = arith.constant 0 : index
    %c0_40 = arith.constant 0 : index
    %53 = vector.load %arg10[%c0_39, %c0_40] : memref<128x128xbf16, #tpu.memory_space<vmem>>, vector<128x128xbf16>
    %cst_41 = arith.constant dense<0.000000e+00> : vector<16x128xf32>
    %54 = tpu.matmul %52, %53, %cst_41 {dimension_numbers = #tpu.dot_dimension_numbers<[1], [0], [0], [1], [0, 0, 1, 1], [], []>} : vector<16x128xbf16>, vector<128x128xbf16>, vector<16x128xf32> -> vector<16x128xf32>
    %c0_42 = arith.constant 0 : index
    %c0_43 = arith.constant 0 : index
    %55 = vector.load %arg11[%c0_42, %c0_43] : memref<1x128xf32, #tpu.memory_space<vmem>>, vector<1x128xf32>
    %56 = vector.broadcast %55 : vector<1x128xf32> to vector<16x128xf32>
    %57 = arith.addf %54, %56 : vector<16x128xf32>
    %c0_44 = arith.constant 0 : index
    %c0_45 = arith.constant 0 : index
    %58 = vector.load %arg12[%c0_44, %c0_45] : memref<16x128xf32, #tpu.memory_space<vmem>>, vector<16x128xf32>
    tpu.vector_store %arg12[%c0_44, %c0_45], %57 {strides = array<i32>} : memref<16x128xf32, #tpu.memory_space<vmem>>, vector<16x128xf32>,
    return
  }
  func.func @transform_0(%arg0: i32) -> (i32, i32) {
    %c0_i32 = arith.constant 0 : i32
    %c0_i32_0 = arith.constant 0 : i32
    return %arg0, %c0_i32 : i32, i32
  }
  func.func @transform_1(%arg0: i32) -> (i32, i32) {
    %c0_i32 = arith.constant 0 : i32
    %c0_i32_0 = arith.constant 0 : i32
    %c0_i32_1 = arith.constant 0 : i32
    return %c0_i32, %c0_i32_0 : i32, i32
  }
  func.func @transform_2(%arg0: i32) -> (i32, i32) {
    %c0_i32 = arith.constant 0 : i32
    %c0_i32_0 = arith.constant 0 : i32
    %c0_i32_1 = arith.constant 0 : i32
    return %c0_i32, %c0_i32_0 : i32, i32
  }
  func.func @transform_3(%arg0: i32) -> (i32, i32, i32) {
    %c0_i32 = arith.constant 0 : i32
    %c0_i32_0 = arith.constant 0 : i32
    %c0_i32_1 = arith.constant 0 : i32
    %c0_i32_2 = arith.constant 0 : i32
    return %c0_i32, %c0_i32_0, %c0_i32_1 : i32, i32, i32
  }
  func.func @transform_4(%arg0: i32) -> (i32, i32, i32) {
    %c0_i32 = arith.constant 0 : i32
    %c0_i32_0 = arith.constant 0 : i32
    %c0_i32_1 = arith.constant 0 : i32
    %c0_i32_2 = arith.constant 0 : i32
    return %c0_i32, %c0_i32_0, %c0_i32_1 : i32, i32, i32
  }
  func.func @transform_5(%arg0: i32) -> (i32, i32, i32) {
    %c0_i32 = arith.constant 0 : i32
    %c0_i32_0 = arith.constant 0 : i32
    %c0_i32_1 = arith.constant 0 : i32
    %c0_i32_2 = arith.constant 0 : i32
    return %c0_i32, %c0_i32_0, %c0_i32_1 : i32, i32, i32
  }
  func.func @transform_6(%arg0: i32) -> (i32, i32, i32) {
    %c0_i32 = arith.constant 0 : i32
    %c0_i32_0 = arith.constant 0 : i32
    %c0_i32_1 = arith.constant 0 : i32
    %c0_i32_2 = arith.constant 0 : i32
    return %c0_i32, %c0_i32_0, %c0_i32_1 : i32, i32, i32
  }
  func.func @transform_7(%arg0: i32) -> (i32, i32) {
    %c0_i32 = arith.constant 0 : i32
    %c0_i32_0 = arith.constant 0 : i32
    %c0_i32_1 = arith.constant 0 : i32
    return %c0_i32, %c0_i32_0 : i32, i32
  }
  func.func @transform_8(%arg0: i32) -> (i32, i32) {
    %c0_i32 = arith.constant 0 : i32
    %c0_i32_0 = arith.constant 0 : i32
    %c0_i32_1 = arith.constant 0 : i32
    return %c0_i32, %c0_i32_0 : i32, i32
  }
  func.func @transform_9(%arg0: i32) -> (i32, i32) {
    %c0_i32 = arith.constant 0 : i32
    %c0_i32_0 = arith.constant 0 : i32
    %c0_i32_1 = arith.constant 0 : i32
    return %c0_i32, %c0_i32_0 : i32, i32
  }
  func.func @transform_10(%arg0: i32) -> (i32, i32) {
    %c0_i32 = arith.constant 0 : i32
    %c0_i32_0 = arith.constant 0 : i32
    %c0_i32_1 = arith.constant 0 : i32
    return %c0_i32, %c0_i32_0 : i32, i32
  }
  func.func @transform_11(%arg0: i32) -> (i32, i32) {
    %c0_i32 = arith.constant 0 : i32
    %c0_i32_0 = arith.constant 0 : i32
    return %arg0, %c0_i32 : i32, i32
  }
}

</mosaic_0001>

<llo_original>
// kernel: tpu_custom_call.1
$region0: #{tpu_custom_call.1}
  #allocation0 [shape = 'u32[]', space=smem, size = 0x4, offset = 0x4, fixed_abs, tag = 'smem constant byte address 0x4 - core index']
  #allocation1 [shape = 'u32[72,128]{1,0:T(1,128)}', space=vmem, size = 0x9000, scoped, tag = 'internal scratch']
  %s0 = inlined_call_operand.vmem [shape: bf16[16,8], index: 0, kind: input, shape index: {}]
  %s1 = inlined_call_operand.vmem [shape: bf16[8,128], index: 1, kind: input, shape index: {}]
  %s2 = inlined_call_operand.vmem [shape: f32[1,128], index: 2, kind: input, shape index: {}]
  %s3 = inlined_call_operand.hbm [shape: bf16[2,128,128], index: 3, kind: input, shape index: {}]
  %s4 = inlined_call_operand.vmem [shape: f32[2,1,128], index: 4, kind: input, shape index: {}]
  %s5 = inlined_call_operand.hbm [shape: bf16[2,128,128], index: 5, kind: input, shape index: {}]
  %s6 = inlined_call_operand.vmem [shape: f32[2,1,128], index: 6, kind: input, shape index: {}]
  %s7 = inlined_call_operand.vmem [shape: f32[1,128], index: 7, kind: input, shape index: {}]
  %s8 = inlined_call_operand.vmem [shape: f32[1,128], index: 8, kind: input, shape index: {}]
  %s9 = inlined_call_operand.hbm [shape: bf16[128,128], index: 9, kind: input, shape index: {}]
  %s10 = inlined_call_operand.vmem [shape: f32[1,128], index: 10, kind: input, shape index: {}]
  %s11 = inlined_call_operand.hbm [shape: f32[16,128], index: 11, kind: output, shape index: {}]
  %s12 = sld [smem:[#allocation0]]
  $region66: #{tpu_custom_call.1} parent=0
    _
  %s14 = ssub.s32 1, %s12
  %s15 = scalar_select 0, %s14, %s12
  $region1: #{tpu_custom_call.1} parent=0
    #allocation2 [shape = 'u8[65536]{0}', space=vmem, size = 0x10000, scoped, tag = 'input window, operand 3, single buffered']
    #allocation3 [shape = 's32[1]{0}', space=sflag, size = 0x4, scoped, tag = 'scoped memory for tpu_custom_call.1']
    #allocation4 [shape = 's32[1]{0}', space=sflag, size = 0x4, scoped, tag = 'scoped memory for tpu_custom_call.1']
    #allocation5 [shape = 'u8[65536]{0}', space=vmem, size = 0x10000, scoped, tag = 'input window, operand 5, single buffered']
    #allocation6 [shape = 's32[1]{0}', space=sflag, size = 0x4, scoped, tag = 'scoped memory for tpu_custom_call.1']
    #allocation7 [shape = 'u8[32768]{0}', space=vmem, size = 0x8000, scoped, tag = 'input window, operand 9, single buffered']
    #allocation8 [shape = 'u8[8192]{0}', space=vmem, size = 0x2000, scoped, tag = 'output window, operand 0, single buffered']
    %16 = vsyncpa [#allocation3], 0
    %17 = vsyncpa [#allocation6], 0
    %18 = vsyncpa [#allocation4], 0
    // Predicated region
    $region2: #{tpu_custom_call.1} parent=1 // pred_check
      _
    $region3: #{tpu_custom_call.1} parent=1 // pred_check_branch
      %20 = sbr.rel (0) target = $region5
    $region4: #{tpu_custom_call.1} parent=1 // pred_region
      _
    $region5: #{tpu_custom_call.1} parent=1 // pred_fallthru
      _
    // Predicated region
    $region6: #{tpu_custom_call.1} parent=1 // pred_check
      _
    $region7: #{tpu_custom_call.1} parent=1 // pred_check_branch
      %22 = sbr.rel (0) target = $region9
    $region8: #{tpu_custom_call.1} parent=1 // pred_region
      _
    $region9: #{tpu_custom_call.1} parent=1 // pred_fallthru
      _
    // Predicated region
    $region10: #{tpu_custom_call.1} parent=1 // pred_check
      _
    $region11: #{tpu_custom_call.1} parent=1 // pred_check_branch
      %24 = sbr.rel (0) target = $region13
    $region12: #{tpu_custom_call.1} parent=1 // pred_region
      _
    $region13: #{tpu_custom_call.1} parent=1 // pred_fallthru
      _
    // Predicated region
    $region14: #{tpu_custom_call.1} parent=1 // pred_check
      _
    $region15: #{tpu_custom_call.1} parent=1 // pred_check_branch
      %26 = sbr.rel (0) target = $region17
    $region16: #{tpu_custom_call.1} parent=1 // pred_region
      %28 = vsyncadd [#allocation3], 0
      %s29 = sshll.u32 %s3, 4
      %s30 = int_to_ptr.hbm [resolvable:$true] %s29
      %s31 = sshll.u32 [#allocation2], 4
      %s32 = int_to_ptr.vmem [resolvable:$true] %s31
      %37 = dma.hbm_to_vmem [thread:$0]  %s30, 2048, %s32, [#allocation3], 64, 64, 4
    $region17: #{tpu_custom_call.1} parent=1 // pred_fallthru
      _
    // Predicated region
    $region18: #{tpu_custom_call.1} parent=1 // pred_check
      _
    $region19: #{tpu_custom_call.1} parent=1 // pred_check_branch
      %39 = sbr.rel (0) target = $region21
    $region20: #{tpu_custom_call.1} parent=1 // pred_region
      _
    $region21: #{tpu_custom_call.1} parent=1 // pred_fallthru
      _
    // Predicated region
    $region22: #{tpu_custom_call.1} parent=1 // pred_check
      _
    $region23: #{tpu_custom_call.1} parent=1 // pred_check_branch
      %41 = sbr.rel (0) target = $region25
    $region24: #{tpu_custom_call.1} parent=1 // pred_region
      %43 = vsyncadd [#allocation6], 0
      %s44 = sshll.u32 %s5, 4
      %s45 = int_to_ptr.hbm [resolvable:$true] %s44
      %s46 = sshll.u32 [#allocation5], 4
      %s47 = int_to_ptr.vmem [resolvable:$true] %s46
      %52 = dma.hbm_to_vmem [thread:$0]  %s45, 2048, %s47, [#allocation6], 64, 64, 4
    $region25: #{tpu_custom_call.1} parent=1 // pred_fallthru
      _
    // Predicated region
    $region26: #{tpu_custom_call.1} parent=1 // pred_check
      _
    $region27: #{tpu_custom_call.1} parent=1 // pred_check_branch
      %54 = sbr.rel (0) target = $region29
    $region28: #{tpu_custom_call.1} parent=1 // pred_region
      _
    $region29: #{tpu_custom_call.1} parent=1 // pred_fallthru
      _
    // Predicated region
    $region30: #{tpu_custom_call.1} parent=1 // pred_check
      _
    $region31: #{tpu_custom_call.1} parent=1 // pred_check_branch
      %56 = sbr.rel (0) target = $region33
    $region32: #{tpu_custom_call.1} parent=1 // pred_region
      _
    $region33: #{tpu_custom_call.1} parent=1 // pred_fallthru
      _
    // Predicated region
    $region34: #{tpu_custom_call.1} parent=1 // pred_check
      _
    $region35: #{tpu_custom_call.1} parent=1 // pred_check_branch
      %58 = sbr.rel (0) target = $region37
    $region36: #{tpu_custom_call.1} parent=1 // pred_region
      _
    $region37: #{tpu_custom_call.1} parent=1 // pred_fallthru
      _
    // Predicated region
    $region38: #{tpu_custom_call.1} parent=1 // pred_check
      _
    $region39: #{tpu_custom_call.1} parent=1 // pred_check_branch
      %60 = sbr.rel (0) target = $region41
    $region40: #{tpu_custom_call.1} parent=1 // pred_region
      %62 = vsyncadd [#allocation6], 0
      %s63 = sshll.u32 %s9, 4
      %s64 = int_to_ptr.hbm [resolvable:$true] %s63
      %s65 = sshll.u32 [#allocation7], 4
      %s66 = int_to_ptr.vmem [resolvable:$true] %s65
      %71 = dma.hbm_to_vmem [thread:$0]  %s64, 1024, %s66, [#allocation6], 64, 64, 4
    $region41: #{tpu_custom_call.1} parent=1 // pred_fallthru
      _
    // Predicated region
    $region42: #{tpu_custom_call.1} parent=1 // pred_check
      _
    $region43: #{tpu_custom_call.1} parent=1 // pred_check_branch
      %73 = sbr.rel (0) target = $region45
    $region44: #{tpu_custom_call.1} parent=1 // pred_region
      _
    $region45: #{tpu_custom_call.1} parent=1 // pred_fallthru
      _
    // Predicated region
    $region46: #{tpu_custom_call.1} parent=1 // pred_check
      _
    $region47: #{tpu_custom_call.1} parent=1 // pred_check_branch
      %75 = sbr.rel (0) target = $region49
    $region48: #{tpu_custom_call.1} parent=1 // pred_region
      %77 = dma.done [#allocation3], 2048
    $region49: #{tpu_custom_call.1} parent=1 // pred_fallthru
      _
    // Predicated region
    $region50: #{tpu_custom_call.1} parent=1 // pred_check
      _
    $region51: #{tpu_custom_call.1} parent=1 // pred_check_branch
      %79 = sbr.rel (0) target = $region53
    $region52: #{tpu_custom_call.1} parent=1 // pred_region
      %81 = dma.done [#allocation6], 2048
    $region53: #{tpu_custom_call.1} parent=1 // pred_fallthru
      _
    // Predicated region
    $region54: #{tpu_custom_call.1} parent=1 // pred_check
      _
    $region55: #{tpu_custom_call.1} parent=1 // pred_check_branch
      %83 = sbr.rel (0) target = $region57
    $region56: #{tpu_custom_call.1} parent=1 // pred_region
      %85 = dma.done [#allocation6], 1024
    $region57: #{tpu_custom_call.1} parent=1 // pred_fallthru
      _
    %v87 = vld [vmem:[%s0] sm:$0xf]
    %v88 = vld [vmem:[%s0 + $0x4] sm:$0xf]
    %v89 = vld [vmem:[%s1] sm:$0xf]
    %v90 = vld [vmem:[%s2] sm:$0x1]
    %v92 = vperm.slane %v90, 0
    %v96 = vunpack.c.l.b16 %v87
    %v97 = vunpack.c.l.b16 %v88
    %v98 = vpack.c.b16 %v97, %v96
    %vm99 = vcmask 64512
    %v101 = vsel %vm99, %v98, 0
    %vm103 = vcmask 1043456
    %v105 = vsel %vm103, %v89, 0
    %107 = vmatpush.bf16.msra.mxu0 0
    %108 = vmatpush.bf16.msra.mxu0 0
    %109 = vmatpush.bf16.msra.mxu0 0
    %110 = vmatpush.bf16.msra.mxu0 0
    %111 = vmatpush.bf16.msra.mxu0 0
    %112 = vmatpush.bf16.msra.mxu0 0
    %113 = vmatpush.bf16.msra.mxu0 0
    %114 = vmatpush.bf16.msra.mxu0 %v105
    %115 = vmatmul.bf16.gmra.mxu0 %v101
    %v116 = vpop.f32.mrf.mxu0
    %v117 = vadd.f32 %v92, %v116
    %v118 = vpop.f32.mrf.mxu0
    %v119 = vadd.f32 %v92, %v118
    %120 = vdwg.mxu0
    %v121 = vpack.c.bf16 %v119, %v117
    %v122 = vld [vmem:[#allocation2] sm:$0xf]
    %v123 = vld [vmem:[#allocation2 + $0x4] sm:$0xf]
    %v124 = vld [vmem:[#allocation2 + $0x8] sm:$0xf]
    %v125 = vld [vmem:[#allocation2 + $0xc] sm:$0xf]
    %v126 = vld [vmem:[#allocation2 + $0x10] sm:$0xf]
    %v127 = vld [vmem:[#allocation2 + $0x14] sm:$0xf]
    %v128 = vld [vmem:[#allocation2 + $0x18] sm:$0xf]
    %v129 = vld [vmem:[#allocation2 + $0x1c] sm:$0xf]
    %v130 = vld [vmem:[#allocation2 + $0x20] sm:$0xf]
    %v131 = vld [vmem:[#allocation2 + $0x24] sm:$0xf]
    %v132 = vld [vmem:[#allocation2 + $0x28] sm:$0xf]
    %v133 = vld [vmem:[#allocation2 + $0x2c] sm:$0xf]
    %v134 = vld [vmem:[#allocation2 + $0x30] sm:$0xf]
    %v135 = vld [vmem:[#allocation2 + $0x34] sm:$0xf]
    %v136 = vld [vmem:[#allocation2 + $0x38] sm:$0xf]
    %v137 = vld [vmem:[#allocation2 + $0x3c] sm:$0xf]
    %v138 = vld [vmem:[%s4] sm:$0x1]
    %v140 = vperm.slane %v138, 0
    %v158 = vunpack.c.l.b16 %v122
    %v159 = vunpack.c.l.b16 %v123
    %v160 = vunpack.c.l.b16 %v124
    %v161 = vunpack.c.l.b16 %v125
    %v162 = vunpack.c.l.b16 %v126
    %v163 = vunpack.c.l.b16 %v127
    %v164 = vunpack.c.l.b16 %v128
    %v165 = vunpack.c.l.b16 %v129
    %v166 = vunpack.c.l.b16 %v130
    %v167 = vunpack.c.l.b16 %v131
    %v168 = vunpack.c.l.b16 %v132
    %v169 = vunpack.c.l.b16 %v133
    %v170 = vunpack.c.l.b16 %v134
    %v171 = vunpack.c.l.b16 %v135
    %v172 = vunpack.c.l.b16 %v136
    %v173 = vunpack.c.l.b16 %v137
    %v174 = vpack.c.b16 %v159, %v158
    %v175 = vpack.c.b16 %v161, %v160
    %v176 = vpack.c.b16 %v163, %v162
    %v177 = vpack.c.b16 %v165, %v164
    %v178 = vpack.c.b16 %v167, %v166
    %v179 = vpack.c.b16 %v169, %v168
    %v180 = vpack.c.b16 %v171, %v170
    %v181 = vpack.c.b16 %v173, %v172
    %190 = vmatpush.bf16.msra.mxu0 %v181
    %191 = vmatpush.bf16.msra.mxu0 %v180
    %192 = vmatpush.bf16.msra.mxu0 %v179
    %193 = vmatpush.bf16.msra.mxu0 %v178
    %194 = vmatpush.bf16.msra.mxu0 %v177
    %195 = vmatpush.bf16.msra.mxu0 %v176
    %196 = vmatpush.bf16.msra.mxu0 %v175
    %197 = vmatpush.bf16.msra.mxu0 %v174
    %198 = vmatmul.bf16.gmra.mxu0 %v121
    %v199 = vpop.f32.mrf.mxu0
    %v200 = vadd.f32 %v140, %v199
    %v201 = vpop.f32.mrf.mxu0
    %v202 = vadd.f32 %v140, %v201
    %203 = vdwg.mxu0
    %v204 = vmax.f32 %v200, 0.0
    %v205 = vmax.f32 %v202, 0.0
    %v206 = vpack.c.bf16 %v205, %v204
    %v207 = vld [vmem:[#allocation5] sm:$0xf]
    %v208 = vld [vmem:[#allocation5 + $0x4] sm:$0xf]
    %v209 = vld [vmem:[#allocation5 + $0x8] sm:$0xf]
    %v210 = vld [vmem:[#allocation5 + $0xc] sm:$0xf]
    %v211 = vld [vmem:[#allocation5 + $0x10] sm:$0xf]
    %v212 = vld [vmem:[#allocation5 + $0x14] sm:$0xf]
    %v213 = vld [vmem:[#allocation5 + $0x18] sm:$0xf]
    %v214 = vld [vmem:[#allocation5 + $0x1c] sm:$0xf]
    %v215 = vld [vmem:[#allocation5 + $0x20] sm:$0xf]
    %v216 = vld [vmem:[#allocation5 + $0x24] sm:$0xf]
    %v217 = vld [vmem:[#allocation5 + $0x28] sm:$0xf]
    %v218 = vld [vmem:[#allocation5 + $0x2c] sm:$0xf]
    %v219 = vld [vmem:[#allocation5 + $0x30] sm:$0xf]
    %v220 = vld [vmem:[#allocation5 + $0x34] sm:$0xf]
    %v221 = vld [vmem:[#allocation5 + $0x38] sm:$0xf]
    %v222 = vld [vmem:[#allocation5 + $0x3c] sm:$0xf]
    %v223 = vld [vmem:[%s6] sm:$0x1]
    %v225 = vperm.slane %v223, 0
    %v243 = vunpack.c.l.b16 %v207
    %v244 = vunpack.c.l.b16 %v208
    %v245 = vunpack.c.l.b16 %v209
    %v246 = vunpack.c.l.b16 %v210
    %v247 = vunpack.c.l.b16 %v211
    %v248 = vunpack.c.l.b16 %v212
    %v249 = vunpack.c.l.b16 %v213
    %v250 = vunpack.c.l.b16 %v214
    %v251 = vunpack.c.l.b16 %v215
    %v252 = vunpack.c.l.b16 %v216
    %v253 = vunpack.c.l.b16 %v217
    %v254 = vunpack.c.l.b16 %v218
    %v255 = vunpack.c.l.b16 %v219
    %v256 = vunpack.c.l.b16 %v220
    %v257 = vunpack.c.l.b16 %v221
    %v258 = vunpack.c.l.b16 %v222
    %v259 = vpack.c.b16 %v244, %v243
    %v260 = vpack.c.b16 %v246, %v245
    %v261 = vpack.c.b16 %v248, %v247
    %v262 = vpack.c.b16 %v250, %v249
    %v263 = vpack.c.b16 %v252, %v251
    %v264 = vpack.c.b16 %v254, %v253
    %v265 = vpack.c.b16 %v256, %v255
    %v266 = vpack.c.b16 %v258, %v257
    %275 = vmatpush.bf16.msra.mxu0 %v266
    %276 = vmatpush.bf16.msra.mxu0 %v265
    %277 = vmatpush.bf16.msra.mxu0 %v264
    %278 = vmatpush.bf16.msra.mxu0 %v263
    %279 = vmatpush.bf16.msra.mxu0 %v262
    %280 = vmatpush.bf16.msra.mxu0 %v261
    %281 = vmatpush.bf16.msra.mxu0 %v260
    %282 = vmatpush.bf16.msra.mxu0 %v259
    %283 = vmatmul.bf16.gmra.mxu0 %v206
    %v284 = vpop.f32.mrf.mxu0
    %v285 = vadd.f32 %v225, %v284
    %v286 = vpop.f32.mrf.mxu0
    %v287 = vadd.f32 %v225, %v286
    %288 = vdwg.mxu0
    %v289 = vadd.f32 %v117, %v285
    %v290 = vadd.f32 %v119, %v287
    %v291 = vpack.c.bf16 %v290, %v289
    %s292 = scalar_lea.vmem [#allocation2], 64
    %v293 = vld [vmem:[%s292] sm:$0xf]
    %v294 = vld [vmem:[%s292 + $0x4] sm:$0xf]
    %v295 = vld [vmem:[%s292 + $0x8] sm:$0xf]
    %v296 = vld [vmem:[%s292 + $0xc] sm:$0xf]
    %v297 = vld [vmem:[%s292 + $0x10] sm:$0xf]
    %v298 = vld [vmem:[%s292 + $0x14] sm:$0xf]
    %v299 = vld [vmem:[%s292 + $0x18] sm:$0xf]
    %v300 = vld [vmem:[%s292 + $0x1c] sm:$0xf]
    %v301 = vld [vmem:[%s292 + $0x20] sm:$0xf]
    %v302 = vld [vmem:[%s292 + $0x24] sm:$0xf]
    %v303 = vld [vmem:[%s292 + $0x28] sm:$0xf]
    %v304 = vld [vmem:[%s292 + $0x2c] sm:$0xf]
    %v305 = vld [vmem:[%s292 + $0x30] sm:$0xf]
    %v306 = vld [vmem:[%s292 + $0x34] sm:$0xf]
    %v307 = vld [vmem:[%s292 + $0x38] sm:$0xf]
    %v308 = vld [vmem:[%s292 + $0x3c] sm:$0xf]
    %s309 = scalar_lea.vmem %s4, 1
    %v310 = vld [vmem:[%s309] sm:$0x1]
    %v312 = vperm.slane %v310, 0
    %v330 = vunpack.c.l.b16 %v293
    %v331 = vunpack.c.l.b16 %v294
    %v332 = vunpack.c.l.b16 %v295
    %v333 = vunpack.c.l.b16 %v296
    %v334 = vunpack.c.l.b16 %v297
    %v335 = vunpack.c.l.b16 %v298
    %v336 = vunpack.c.l.b16 %v299
    %v337 = vunpack.c.l.b16 %v300
    %v338 = vunpack.c.l.b16 %v301
    %v339 = vunpack.c.l.b16 %v302
    %v340 = vunpack.c.l.b16 %v303
    %v341 = vunpack.c.l.b16 %v304
    %v342 = vunpack.c.l.b16 %v305
    %v343 = vunpack.c.l.b16 %v306
    %v344 = vunpack.c.l.b16 %v307
    %v345 = vunpack.c.l.b16 %v308
    %v346 = vpack.c.b16 %v331, %v330
    %v347 = vpack.c.b16 %v333, %v332
    %v348 = vpack.c.b16 %v335, %v334
    %v349 = vpack.c.b16 %v337, %v336
    %v350 = vpack.c.b16 %v339, %v338
    %v351 = vpack.c.b16 %v341, %v340
    %v352 = vpack.c.b16 %v343, %v342
    %v353 = vpack.c.b16 %v345, %v344
    %362 = vmatpush.bf16.msra.mxu0 %v353
    %363 = vmatpush.bf16.msra.mxu0 %v352
    %364 = vmatpush.bf16.msra.mxu0 %v351
    %365 = vmatpush.bf16.msra.mxu0 %v350
    %366 = vmatpush.bf16.msra.mxu0 %v349
    %367 = vmatpush.bf16.msra.mxu0 %v348
    %368 = vmatpush.bf16.msra.mxu0 %v347
    %369 = vmatpush.bf16.msra.mxu0 %v346
    %370 = vmatmul.bf16.gmra.mxu0 %v291
    %v371 = vpop.f32.mrf.mxu0
    %v372 = vadd.f32 %v312, %v371
    %v373 = vpop.f32.mrf.mxu0
    %v374 = vadd.f32 %v312, %v373
    %375 = vdwg.mxu0
    %v376 = vmax.f32 %v372, 0.0
    %v377 = vmax.f32 %v374, 0.0
    %v378 = vpack.c.bf16 %v377, %v376
    %s379 = scalar_lea.vmem [#allocation5], 64
    %v380 = vld [vmem:[%s379] sm:$0xf]
    %v381 = vld [vmem:[%s379 + $0x4] sm:$0xf]
    %v382 = vld [vmem:[%s379 + $0x8] sm:$0xf]
    %v383 = vld [vmem:[%s379 + $0xc] sm:$0xf]
    %v384 = vld [vmem:[%s379 + $0x10] sm:$0xf]
    %v385 = vld [vmem:[%s379 + $0x14] sm:$0xf]
    %v386 = vld [vmem:[%s379 + $0x18] sm:$0xf]
    %v387 = vld [vmem:[%s379 + $0x1c] sm:$0xf]
    %v388 = vld [vmem:[%s379 + $0x20] sm:$0xf]
    %v389 = vld [vmem:[%s379 + $0x24] sm:$0xf]
    %v390 = vld [vmem:[%s379 + $0x28] sm:$0xf]
    %v391 = vld [vmem:[%s379 + $0x2c] sm:$0xf]
    %v392 = vld [vmem:[%s379 + $0x30] sm:$0xf]
    %v393 = vld [vmem:[%s379 + $0x34] sm:$0xf]
    %v394 = vld [vmem:[%s379 + $0x38] sm:$0xf]
    %v395 = vld [vmem:[%s379 + $0x3c] sm:$0xf]
    %s396 = scalar_lea.vmem %s6, 1
    %v397 = vld [vmem:[%s396] sm:$0x1]
    %v399 = vperm.slane %v397, 0
    %v417 = vunpack.c.l.b16 %v380
    %v418 = vunpack.c.l.b16 %v381
    %v419 = vunpack.c.l.b16 %v382
    %v420 = vunpack.c.l.b16 %v383
    %v421 = vunpack.c.l.b16 %v384
    %v422 = vunpack.c.l.b16 %v385
    %v423 = vunpack.c.l.b16 %v386
    %v424 = vunpack.c.l.b16 %v387
    %v425 = vunpack.c.l.b16 %v388
    %v426 = vunpack.c.l.b16 %v389
    %v427 = vunpack.c.l.b16 %v390
    %v428 = vunpack.c.l.b16 %v391
    %v429 = vunpack.c.l.b16 %v392
    %v430 = vunpack.c.l.b16 %v393
    %v431 = vunpack.c.l.b16 %v394
    %v432 = vunpack.c.l.b16 %v395
    %v433 = vpack.c.b16 %v418, %v417
    %v434 = vpack.c.b16 %v420, %v419
    %v435 = vpack.c.b16 %v422, %v421
    %v436 = vpack.c.b16 %v424, %v423
    %v437 = vpack.c.b16 %v426, %v425
    %v438 = vpack.c.b16 %v428, %v427
    %v439 = vpack.c.b16 %v430, %v429
    %v440 = vpack.c.b16 %v432, %v431
    %449 = vmatpush.bf16.msra.mxu0 %v440
    %450 = vmatpush.bf16.msra.mxu0 %v439
    %451 = vmatpush.bf16.msra.mxu0 %v438
    %452 = vmatpush.bf16.msra.mxu0 %v437
    %453 = vmatpush.bf16.msra.mxu0 %v436
    %454 = vmatpush.bf16.msra.mxu0 %v435
    %455 = vmatpush.bf16.msra.mxu0 %v434
    %456 = vmatpush.bf16.msra.mxu0 %v433
    %457 = vmatmul.bf16.gmra.mxu0 %v378
    %v458 = vpop.f32.mrf.mxu0
    %v459 = vadd.f32 %v399, %v458
    %v460 = vpop.f32.mrf.mxu0
    %v461 = vadd.f32 %v399, %v460
    %462 = vdwg.mxu0
    %v463 = vadd.f32 %v289, %v459
    %v464 = vadd.f32 %v290, %v461
    %v465 = vld [vmem:[%s7] sm:$0x1]
    %v467 = vperm.slane %v465, 0
    %v469 = vmul.f32 %v463, %v467
    %v470 = vmul.f32 %v464, %v467
    %v471 = vld [vmem:[%s8] sm:$0x1]
    %v473 = vperm.slane %v471, 0
    %v475 = vadd.f32 %v469, %v473
    %v476 = vadd.f32 %v470, %v473
    %v477 = vmax.f32 %v475, 0.0
    %v478 = vmax.f32 %v476, 0.0
    %v479 = vpack.c.bf16 %v478, %v477
    %v480 = vld [vmem:[#allocation7] sm:$0xf]
    %v481 = vld [vmem:[#allocation7 + $0x4] sm:$0xf]
    %v482 = vld [vmem:[#allocation7 + $0x8] sm:$0xf]
    %v483 = vld [vmem:[#allocation7 + $0xc] sm:$0xf]
    %v484 = vld [vmem:[#allocation7 + $0x10] sm:$0xf]
    %v485 = vld [vmem:[#allocation7 + $0x14] sm:$0xf]
    %v486 = vld [vmem:[#allocation7 + $0x18] sm:$0xf]
    %v487 = vld [vmem:[#allocation7 + $0x1c] sm:$0xf]
    %v488 = vld [vmem:[#allocation7 + $0x20] sm:$0xf]
    %v489 = vld [vmem:[#allocation7 + $0x24] sm:$0xf]
    %v490 = vld [vmem:[#allocation7 + $0x28] sm:$0xf]
    %v491 = vld [vmem:[#allocation7 + $0x2c] sm:$0xf]
    %v492 = vld [vmem:[#allocation7 + $0x30] sm:$0xf]
    %v493 = vld [vmem:[#allocation7 + $0x34] sm:$0xf]
    %v494 = vld [vmem:[#allocation7 + $0x38] sm:$0xf]
    %v495 = vld [vmem:[#allocation7 + $0x3c] sm:$0xf]
    %v496 = vld [vmem:[%s10] sm:$0x1]
    %v498 = vperm.slane %v496, 0
    %v516 = vunpack.c.l.b16 %v480
    %v517 = vunpack.c.l.b16 %v481
    %v518 = vunpack.c.l.b16 %v482
    %v519 = vunpack.c.l.b16 %v483
    %v520 = vunpack.c.l.b16 %v484
    %v521 = vunpack.c.l.b16 %v485
    %v522 = vunpack.c.l.b16 %v486
    %v523 = vunpack.c.l.b16 %v487
    %v524 = vunpack.c.l.b16 %v488
    %v525 = vunpack.c.l.b16 %v489
    %v526 = vunpack.c.l.b16 %v490
    %v527 = vunpack.c.l.b16 %v491
    %v528 = vunpack.c.l.b16 %v492
    %v529 = vunpack.c.l.b16 %v493
    %v530 = vunpack.c.l.b16 %v494
    %v531 = vunpack.c.l.b16 %v495
    %v532 = vpack.c.b16 %v517, %v516
    %v533 = vpack.c.b16 %v519, %v518
    %v534 = vpack.c.b16 %v521, %v520
    %v535 = vpack.c.b16 %v523, %v522
    %v536 = vpack.c.b16 %v525, %v524
    %v537 = vpack.c.b16 %v527, %v526
    %v538 = vpack.c.b16 %v529, %v528
    %v539 = vpack.c.b16 %v531, %v530
    %548 = vmatpush.bf16.msra.mxu0 %v539
    %549 = vmatpush.bf16.msra.mxu0 %v538
    %550 = vmatpush.bf16.msra.mxu0 %v537
    %551 = vmatpush.bf16.msra.mxu0 %v536
    %552 = vmatpush.bf16.msra.mxu0 %v535
    %553 = vmatpush.bf16.msra.mxu0 %v534
    %554 = vmatpush.bf16.msra.mxu0 %v533
    %555 = vmatpush.bf16.msra.mxu0 %v532
    %556 = vmatmul.bf16.gmra.mxu0 %v479
    %v557 = vpop.f32.mrf.mxu0
    %v558 = vadd.f32 %v498, %v557
    %v559 = vpop.f32.mrf.mxu0
    %v560 = vadd.f32 %v498, %v559
    %561 = vdwg.mxu0
    %562 = vst [vmem:[#allocation8] sm:$0xff] %v558
    %563 = vst [vmem:[#allocation8 + $0x8] sm:$0xff] %v560
    // Predicated region
    $region58: #{tpu_custom_call.1} parent=1 // pred_check
      _
    $region59: #{tpu_custom_call.1} parent=1 // pred_check_branch
      %565 = sbr.rel (0) target = $region61
    $region60: #{tpu_custom_call.1} parent=1 // pred_region
      %567 = vsyncadd [#allocation4], 0
      %s568 = sshll.u32 [#allocation8], 4
      %s569 = int_to_ptr.vmem [resolvable:$true] %s568
      %s570 = sshll.u32 %s11, 4
      %s571 = int_to_ptr.hbm [resolvable:$true] %s570
      %576 = dma.vmem_to_hbm [thread:$0]  %s569, 256, %s571, [#allocation4], 128, 128, 8
    $region61: #{tpu_custom_call.1} parent=1 // pred_fallthru
      _
    // Predicated region
    $region62: #{tpu_custom_call.1} parent=1 // pred_check
      _
    $region63: #{tpu_custom_call.1} parent=1 // pred_check_branch
      %578 = sbr.rel (0) target = $region65
    $region64: #{tpu_custom_call.1} parent=1 // pred_region
      %580 = dma.done [#allocation4], 256
    $region65: #{tpu_custom_call.1} parent=1 // pred_fallthru
      _
    %581 = vsyncpa [#allocation3], 1
    %582 = vsyncpa [#allocation6], 1
    %583 = vsyncpa [#allocation4], 1

// kernel: tpu_custom_call.1
$region0: #{tpu_custom_call.1}
  #allocation0 [shape = 'u32[]', space=smem, size = 0x4, offset = 0x4, fixed_abs, tag = 'smem constant byte address 0x4 - core index']
  #allocation1 [shape = 'u32[72,128]{1,0:T(1,128)}', space=vmem, size = 0x9000, scoped, tag = 'internal scratch']
  %s0 = inlined_call_operand.vmem [shape: bf16[16,8], index: 0, kind: input, shape index: {}]
  %s1 = inlined_call_operand.vmem [shape: bf16[8,128], index: 1, kind: input, shape index: {}]
  %s2 = inlined_call_operand.vmem [shape: f32[1,128], index: 2, kind: input, shape index: {}]
  %s3 = inlined_call_operand.hbm [shape: bf16[2,128,128], index: 3, kind: input, shape index: {}]
  %s4 = inlined_call_operand.vmem [shape: f32[2,1,128], index: 4, kind: input, shape index: {}]
  %s5 = inlined_call_operand.hbm [shape: bf16[2,128,128], index: 5, kind: input, shape index: {}]
  %s6 = inlined_call_operand.vmem [shape: f32[2,1,128], index: 6, kind: input, shape index: {}]
  %s7 = inlined_call_operand.vmem [shape: f32[1,128], index: 7, kind: input, shape index: {}]
  %s8 = inlined_call_operand.vmem [shape: f32[1,128], index: 8, kind: input, shape index: {}]
  %s9 = inlined_call_operand.hbm [shape: bf16[128,128], index: 9, kind: input, shape index: {}]
  %s10 = inlined_call_operand.vmem [shape: f32[1,128], index: 10, kind: input, shape index: {}]
  %s11 = inlined_call_operand.hbm [shape: f32[16,128], index: 11, kind: output, shape index: {}]
  %s12 = sld [smem:[#allocation0]]
  $region66: #{tpu_custom_call.1} parent=0
    _
  %s14 = ssub.s32 1, %s12
  %s15 = scalar_select 0, %s14, %s12
  $region1: #{tpu_custom_call.1} parent=0
    #allocation2 [shape = 'u8[65536]{0}', space=vmem, size = 0x10000, scoped, tag = 'input window, operand 3, single buffered']
    #allocation3 [shape = 's32[1]{0}', space=sflag, size = 0x4, scoped, tag = 'scoped memory for tpu_custom_call.1']
    #allocation4 [shape = 's32[1]{0}', space=sflag, size = 0x4, scoped, tag = 'scoped memory for tpu_custom_call.1']
    #allocation5 [shape = 'u8[65536]{0}', space=vmem, size = 0x10000, scoped, tag = 'input window, operand 5, single buffered']
    #allocation6 [shape = 's32[1]{0}', space=sflag, size = 0x4, scoped, tag = 'scoped memory for tpu_custom_call.1']
    #allocation7 [shape = 'u8[32768]{0}', space=vmem, size = 0x8000, scoped, tag = 'input window, operand 9, single buffered']
    #allocation8 [shape = 'u8[8192]{0}', space=vmem, size = 0x2000, scoped, tag = 'output window, operand 0, single buffered']
    %16 = vsyncpa [#allocation3], 0
    %17 = vsyncpa [#allocation6], 0
    %18 = vsyncpa [#allocation4], 0
    // Predicated region
    $region2: #{tpu_custom_call.1} parent=1 // pred_check
      _
    $region3: #{tpu_custom_call.1} parent=1 // pred_check_branch
      %20 = sbr.rel (0) target = $region5
    $region4: #{tpu_custom_call.1} parent=1 // pred_region
      _
    $region5: #{tpu_custom_call.1} parent=1 // pred_fallthru
      _
    // Predicated region
    $region6: #{tpu_custom_call.1} parent=1 // pred_check
      _
    $region7: #{tpu_custom_call.1} parent=1 // pred_check_branch
      %22 = sbr.rel (0) target = $region9
    $region8: #{tpu_custom_call.1} parent=1 // pred_region
      _
    $region9: #{tpu_custom_call.1} parent=1 // pred_fallthru
      _
    // Predicated region
    $region10: #{tpu_custom_call.1} parent=1 // pred_check
      _
    $region11: #{tpu_custom_call.1} parent=1 // pred_check_branch
      %24 = sbr.rel (0) target = $region13
    $region12: #{tpu_custom_call.1} parent=1 // pred_region
      _
    $region13: #{tpu_custom_call.1} parent=1 // pred_fallthru
      _
    // Predicated region
    $region14: #{tpu_custom_call.1} parent=1 // pred_check
      _
    $region15: #{tpu_custom_call.1} parent=1 // pred_check_branch
      %26 = sbr.rel (0) target = $region17
    $region16: #{tpu_custom_call.1} parent=1 // pred_region
      %28 = vsyncadd [#allocation3], 0
      %s29 = sshll.u32 %s3, 4
      %s30 = int_to_ptr.hbm [resolvable:$true] %s29
      %s31 = sshll.u32 [#allocation2], 4
      %s32 = int_to_ptr.vmem [resolvable:$true] %s31
      %37 = dma.hbm_to_vmem [thread:$0]  %s30, 2048, %s32, [#allocation3], 64, 64, 4
    $region17: #{tpu_custom_call.1} parent=1 // pred_fallthru
      _
    // Predicated region
    $region18: #{tpu_custom_call.1} parent=1 // pred_check
      _
    $region19: #{tpu_custom_call.1} parent=1 // pred_check_branch
      %39 = sbr.rel (0) target = $region21
    $region20: #{tpu_custom_call.1} parent=1 // pred_region
      _
    $region21: #{tpu_custom_call.1} parent=1 // pred_fallthru
      _
    // Predicated region
    $region22: #{tpu_custom_call.1} parent=1 // pred_check
      _
    $region23: #{tpu_custom_call.1} parent=1 // pred_check_branch
      %41 = sbr.rel (0) target = $region25
    $region24: #{tpu_custom_call.1} parent=1 // pred_region
      %43 = vsyncadd [#allocation6], 0
      %s44 = sshll.u32 %s5, 4
      %s45 = int_to_ptr.hbm [resolvable:$true] %s44
      %s46 = sshll.u32 [#allocation5], 4
      %s47 = int_to_ptr.vmem [resolvable:$true] %s46
      %52 = dma.hbm_to_vmem [thread:$0]  %s45, 2048, %s47, [#allocation6], 64, 64, 4
    $region25: #{tpu_custom_call.1} parent=1 // pred_fallthru
      _
    // Predicated region
    $region26: #{tpu_custom_call.1} parent=1 // pred_check
      _
    $region27: #{tpu_custom_call.1} parent=1 // pred_check_branch
      %54 = sbr.rel (0) target = $region29
    $region28: #{tpu_custom_call.1} parent=1 // pred_region
      _
    $region29: #{tpu_custom_call.1} parent=1 // pred_fallthru
      _
    // Predicated region
    $region30: #{tpu_custom_call.1} parent=1 // pred_check
      _
    $region31: #{tpu_custom_call.1} parent=1 // pred_check_branch
      %56 = sbr.rel (0) target = $region33
    $region32: #{tpu_custom_call.1} parent=1 // pred_region
      _
    $region33: #{tpu_custom_call.1} parent=1 // pred_fallthru
      _
    // Predicated region
    $region34: #{tpu_custom_call.1} parent=1 // pred_check
      _
    $region35: #{tpu_custom_call.1} parent=1 // pred_check_branch
      %58 = sbr.rel (0) target = $region37
    $region36: #{tpu_custom_call.1} parent=1 // pred_region
      _
    $region37: #{tpu_custom_call.1} parent=1 // pred_fallthru
      _
    // Predicated region
    $region38: #{tpu_custom_call.1} parent=1 // pred_check
      _
    $region39: #{tpu_custom_call.1} parent=1 // pred_check_branch
      %60 = sbr.rel (0) target = $region41
    $region40: #{tpu_custom_call.1} parent=1 // pred_region
      %62 = vsyncadd [#allocation6], 0
      %s63 = sshll.u32 %s9, 4
      %s64 = int_to_ptr.hbm [resolvable:$true] %s63
      %s65 = sshll.u32 [#allocation7], 4
      %s66 = int_to_ptr.vmem [resolvable:$true] %s65
      %71 = dma.hbm_to_vmem [thread:$0]  %s64, 1024, %s66, [#allocation6], 64, 64, 4
    $region41: #{tpu_custom_call.1} parent=1 // pred_fallthru
      _
    // Predicated region
    $region42: #{tpu_custom_call.1} parent=1 // pred_check
      _
    $region43: #{tpu_custom_call.1} parent=1 // pred_check_branch
      %73 = sbr.rel (0) target = $region45
    $region44: #{tpu_custom_call.1} parent=1 // pred_region
      _
    $region45: #{tpu_custom_call.1} parent=1 // pred_fallthru
      _
    // Predicated region
    $region46: #{tpu_custom_call.1} parent=1 // pred_check
      _
    $region47: #{tpu_custom_call.1} parent=1 // pred_check_branch
      %75 = sbr.rel (0) target = $region49
    $region48: #{tpu_custom_call.1} parent=1 // pred_region
      %77 = dma.done [#allocation3], 2048
    $region49: #{tpu_custom_call.1} parent=1 // pred_fallthru
      _
    // Predicated region
    $region50: #{tpu_custom_call.1} parent=1 // pred_check
      _
    $region51: #{tpu_custom_call.1} parent=1 // pred_check_branch
      %79 = sbr.rel (0) target = $region53
    $region52: #{tpu_custom_call.1} parent=1 // pred_region
      %81 = dma.done [#allocation6], 2048
    $region53: #{tpu_custom_call.1} parent=1 // pred_fallthru
      _
    // Predicated region
    $region54: #{tpu_custom_call.1} parent=1 // pred_check
      _
    $region55: #{tpu_custom_call.1} parent=1 // pred_check_branch
      %83 = sbr.rel (0) target = $region57
    $region56: #{tpu_custom_call.1} parent=1 // pred_region
      %85 = dma.done [#allocation6], 1024
    $region57: #{tpu_custom_call.1} parent=1 // pred_fallthru
      _
    %v87 = vld [vmem:[%s0] sm:$0xf]
    %v88 = vld [vmem:[%s0 + $0x4] sm:$0xf]
    %v89 = vld [vmem:[%s1] sm:$0xf]
    %v90 = vld [vmem:[%s2] sm:$0x1]
    %v92 = vperm.slane %v90, 0
    %v96 = vunpack.c.l.b16 %v87
    %v97 = vunpack.c.l.b16 %v88
    %v98 = vpack.c.b16 %v97, %v96
    %vm99 = vcmask 64512
    %v101 = vsel %vm99, %v98, 0
    %vm103 = vcmask 1043456
    %v105 = vsel %vm103, %v89, 0
    %107 = vmatpush.bf16.msra.mxu0 0
    %108 = vmatpush.bf16.msra.mxu0 0
    %109 = vmatpush.bf16.msra.mxu0 0
    %110 = vmatpush.bf16.msra.mxu0 0
    %111 = vmatpush.bf16.msra.mxu0 0
    %112 = vmatpush.bf16.msra.mxu0 0
    %113 = vmatpush.bf16.msra.mxu0 0
    %114 = vmatpush.bf16.msra.mxu0 %v105
    %115 = vmatmul.bf16.gmra.mxu0 %v101
    %v116 = vpop.f32.mrf.mxu0
    %v117 = vadd.f32 %v92, %v116
    %v118 = vpop.f32.mrf.mxu0
    %v119 = vadd.f32 %v92, %v118
    %120 = vdwg.mxu0
    %v121 = vpack.c.bf16 %v119, %v117
    %v122 = vld [vmem:[#allocation2] sm:$0xf]
    %v123 = vld [vmem:[#allocation2 + $0x4] sm:$0xf]
    %v124 = vld [vmem:[#allocation2 + $0x8] sm:$0xf]
    %v125 = vld [vmem:[#allocation2 + $0xc] sm:$0xf]
    %v126 = vld [vmem:[#allocation2 + $0x10] sm:$0xf]
    %v127 = vld [vmem:[#allocation2 + $0x14] sm:$0xf]
    %v128 = vld [vmem:[#allocation2 + $0x18] sm:$0xf]
    %v129 = vld [vmem:[#allocation2 + $0x1c] sm:$0xf]
    %v130 = vld [vmem:[#allocation2 + $0x20] sm:$0xf]
    %v131 = vld [vmem:[#allocation2 + $0x24] sm:$0xf]
    %v132 = vld [vmem:[#allocation2 + $0x28] sm:$0xf]
    %v133 = vld [vmem:[#allocation2 + $0x2c] sm:$0xf]
    %v134 = vld [vmem:[#allocation2 + $0x30] sm:$0xf]
    %v135 = vld [vmem:[#allocation2 + $0x34] sm:$0xf]
    %v136 = vld [vmem:[#allocation2 + $0x38] sm:$0xf]
    %v137 = vld [vmem:[#allocation2 + $0x3c] sm:$0xf]
    %v138 = vld [vmem:[%s4] sm:$0x1]
    %v140 = vperm.slane %v138, 0
    %v158 = vunpack.c.l.b16 %v122
    %v159 = vunpack.c.l.b16 %v123
    %v160 = vunpack.c.l.b16 %v124
    %v161 = vunpack.c.l.b16 %v125
    %v162 = vunpack.c.l.b16 %v126
    %v163 = vunpack.c.l.b16 %v127
    %v164 = vunpack.c.l.b16 %v128
    %v165 = vunpack.c.l.b16 %v129
    %v166 = vunpack.c.l.b16 %v130
    %v167 = vunpack.c.l.b16 %v131
    %v168 = vunpack.c.l.b16 %v132
    %v169 = vunpack.c.l.b16 %v133
    %v170 = vunpack.c.l.b16 %v134
    %v171 = vunpack.c.l.b16 %v135
    %v172 = vunpack.c.l.b16 %v136
    %v173 = vunpack.c.l.b16 %v137
    %v174 = vpack.c.b16 %v159, %v158
    %v175 = vpack.c.b16 %v161, %v160
    %v176 = vpack.c.b16 %v163, %v162
    %v177 = vpack.c.b16 %v165, %v164
    %v178 = vpack.c.b16 %v167, %v166
    %v179 = vpack.c.b16 %v169, %v168
    %v180 = vpack.c.b16 %v171, %v170
    %v181 = vpack.c.b16 %v173, %v172
    %190 = vmatpush.bf16.msra.mxu0 %v181
    %191 = vmatpush.bf16.msra.mxu0 %v180
    %192 = vmatpush.bf16.msra.mxu0 %v179
    %193 = vmatpush.bf16.msra.mxu0 %v178
    %194 = vmatpush.bf16.msra.mxu0 %v177
    %195 = vmatpush.bf16.msra.mxu0 %v176
    %196 = vmatpush.bf16.msra.mxu0 %v175
    %197 = vmatpush.bf16.msra.mxu0 %v174
    %198 = vmatmul.bf16.gmra.mxu0 %v121
    %v199 = vpop.f32.mrf.mxu0
    %v200 = vadd.f32 %v140, %v199
    %v201 = vpop.f32.mrf.mxu0
    %v202 = vadd.f32 %v140, %v201
    %203 = vdwg.mxu0
    %v204 = vmax.f32 %v200, 0.0
    %v205 = vmax.f32 %v202, 0.0
    %v206 = vpack.c.bf16 %v205, %v204
    %v207 = vld [vmem:[#allocation5] sm:$0xf]
    %v208 = vld [vmem:[#allocation5 + $0x4] sm:$0xf]
    %v209 = vld [vmem:[#allocation5 + $0x8] sm:$0xf]
    %v210 = vld [vmem:[#allocation5 + $0xc] sm:$0xf]
    %v211 = vld [vmem:[#allocation5 + $0x10] sm:$0xf]
    %v212 = vld [vmem:[#allocation5 + $0x14] sm:$0xf]
    %v213 = vld [vmem:[#allocation5 + $0x18] sm:$0xf]
    %v214 = vld [vmem:[#allocation5 + $0x1c] sm:$0xf]
    %v215 = vld [vmem:[#allocation5 + $0x20] sm:$0xf]
    %v216 = vld [vmem:[#allocation5 + $0x24] sm:$0xf]
    %v217 = vld [vmem:[#allocation5 + $0x28] sm:$0xf]
    %v218 = vld [vmem:[#allocation5 + $0x2c] sm:$0xf]
    %v219 = vld [vmem:[#allocation5 + $0x30] sm:$0xf]
    %v220 = vld [vmem:[#allocation5 + $0x34] sm:$0xf]
    %v221 = vld [vmem:[#allocation5 + $0x38] sm:$0xf]
    %v222 = vld [vmem:[#allocation5 + $0x3c] sm:$0xf]
    %v223 = vld [vmem:[%s6] sm:$0x1]
    %v225 = vperm.slane %v223, 0
    %v243 = vunpack.c.l.b16 %v207
    %v244 = vunpack.c.l.b16 %v208
    %v245 = vunpack.c.l.b16 %v209
    %v246 = vunpack.c.l.b16 %v210
    %v247 = vunpack.c.l.b16 %v211
    %v248 = vunpack.c.l.b16 %v212
    %v249 = vunpack.c.l.b16 %v213
    %v250 = vunpack.c.l.b16 %v214
    %v251 = vunpack.c.l.b16 %v215
    %v252 = vunpack.c.l.b16 %v216
    %v253 = vunpack.c.l.b16 %v217
    %v254 = vunpack.c.l.b16 %v218
    %v255 = vunpack.c.l.b16 %v219
    %v256 = vunpack.c.l.b16 %v220
    %v257 = vunpack.c.l.b16 %v221
    %v258 = vunpack.c.l.b16 %v222
    %v259 = vpack.c.b16 %v244, %v243
    %v260 = vpack.c.b16 %v246, %v245
    %v261 = vpack.c.b16 %v248, %v247
    %v262 = vpack.c.b16 %v250, %v249
    %v263 = vpack.c.b16 %v252, %v251
    %v264 = vpack.c.b16 %v254, %v253
    %v265 = vpack.c.b16 %v256, %v255
    %v266 = vpack.c.b16 %v258, %v257
    %275 = vmatpush.bf16.msra.mxu0 %v266
    %276 = vmatpush.bf16.msra.mxu0 %v265
    %277 = vmatpush.bf16.msra.mxu0 %v264
    %278 = vmatpush.bf16.msra.mxu0 %v263
    %279 = vmatpush.bf16.msra.mxu0 %v262
    %280 = vmatpush.bf16.msra.mxu0 %v261
    %281 = vmatpush.bf16.msra.mxu0 %v260
    %282 = vmatpush.bf16.msra.mxu0 %v259
    %283 = vmatmul.bf16.gmra.mxu0 %v206
    %v284 = vpop.f32.mrf.mxu0
    %v285 = vadd.f32 %v225, %v284
    %v286 = vpop.f32.mrf.mxu0
    %v287 = vadd.f32 %v225, %v286
    %288 = vdwg.mxu0
    %v289 = vadd.f32 %v117, %v285
    %v290 = vadd.f32 %v119, %v287
    %v291 = vpack.c.bf16 %v290, %v289
    %s292 = scalar_lea.vmem [#allocation2], 64
    %v293 = vld [vmem:[%s292] sm:$0xf]
    %v294 = vld [vmem:[%s292 + $0x4] sm:$0xf]
    %v295 = vld [vmem:[%s292 + $0x8] sm:$0xf]
    %v296 = vld [vmem:[%s292 + $0xc] sm:$0xf]
    %v297 = vld [vmem:[%s292 + $0x10] sm:$0xf]
    %v298 = vld [vmem:[%s292 + $0x14] sm:$0xf]
    %v299 = vld [vmem:[%s292 + $0x18] sm:$0xf]
    %v300 = vld [vmem:[%s292 + $0x1c] sm:$0xf]
    %v301 = vld [vmem:[%s292 + $0x20] sm:$0xf]
    %v302 = vld [vmem:[%s292 + $0x24] sm:$0xf]
    %v303 = vld [vmem:[%s292 + $0x28] sm:$0xf]
    %v304 = vld [vmem:[%s292 + $0x2c] sm:$0xf]
    %v305 = vld [vmem:[%s292 + $0x30] sm:$0xf]
    %v306 = vld [vmem:[%s292 + $0x34] sm:$0xf]
    %v307 = vld [vmem:[%s292 + $0x38] sm:$0xf]
    %v308 = vld [vmem:[%s292 + $0x3c] sm:$0xf]
    %s309 = scalar_lea.vmem %s4, 1
    %v310 = vld [vmem:[%s309] sm:$0x1]
    %v312 = vperm.slane %v310, 0
    %v330 = vunpack.c.l.b16 %v293
    %v331 = vunpack.c.l.b16 %v294
    %v332 = vunpack.c.l.b16 %v295
    %v333 = vunpack.c.l.b16 %v296
    %v334 = vunpack.c.l.b16 %v297
    %v335 = vunpack.c.l.b16 %v298
    %v336 = vunpack.c.l.b16 %v299
    %v337 = vunpack.c.l.b16 %v300
    %v338 = vunpack.c.l.b16 %v301
    %v339 = vunpack.c.l.b16 %v302
    %v340 = vunpack.c.l.b16 %v303
    %v341 = vunpack.c.l.b16 %v304
    %v342 = vunpack.c.l.b16 %v305
    %v343 = vunpack.c.l.b16 %v306
    %v344 = vunpack.c.l.b16 %v307
    %v345 = vunpack.c.l.b16 %v308
    %v346 = vpack.c.b16 %v331, %v330
    %v347 = vpack.c.b16 %v333, %v332
    %v348 = vpack.c.b16 %v335, %v334
    %v349 = vpack.c.b16 %v337, %v336
    %v350 = vpack.c.b16 %v339, %v338
    %v351 = vpack.c.b16 %v341, %v340
    %v352 = vpack.c.b16 %v343, %v342
    %v353 = vpack.c.b16 %v345, %v344
    %362 = vmatpush.bf16.msra.mxu0 %v353
    %363 = vmatpush.bf16.msra.mxu0 %v352
    %364 = vmatpush.bf16.msra.mxu0 %v351
    %365 = vmatpush.bf16.msra.mxu0 %v350
    %366 = vmatpush.bf16.msra.mxu0 %v349
    %367 = vmatpush.bf16.msra.mxu0 %v348
    %368 = vmatpush.bf16.msra.mxu0 %v347
    %369 = vmatpush.bf16.msra.mxu0 %v346
    %370 = vmatmul.bf16.gmra.mxu0 %v291
    %v371 = vpop.f32.mrf.mxu0
    %v372 = vadd.f32 %v312, %v371
    %v373 = vpop.f32.mrf.mxu0
    %v374 = vadd.f32 %v312, %v373
    %375 = vdwg.mxu0
    %v376 = vmax.f32 %v372, 0.0
    %v377 = vmax.f32 %v374, 0.0
    %v378 = vpack.c.bf16 %v377, %v376
    %s379 = scalar_lea.vmem [#allocation5], 64
    %v380 = vld [vmem:[%s379] sm:$0xf]
    %v381 = vld [vmem:[%s379 + $0x4] sm:$0xf]
    %v382 = vld [vmem:[%s379 + $0x8] sm:$0xf]
    %v383 = vld [vmem:[%s379 + $0xc] sm:$0xf]
    %v384 = vld [vmem:[%s379 + $0x10] sm:$0xf]
    %v385 = vld [vmem:[%s379 + $0x14] sm:$0xf]
    %v386 = vld [vmem:[%s379 + $0x18] sm:$0xf]
    %v387 = vld [vmem:[%s379 + $0x1c] sm:$0xf]
    %v388 = vld [vmem:[%s379 + $0x20] sm:$0xf]
    %v389 = vld [vmem:[%s379 + $0x24] sm:$0xf]
    %v390 = vld [vmem:[%s379 + $0x28] sm:$0xf]
    %v391 = vld [vmem:[%s379 + $0x2c] sm:$0xf]
    %v392 = vld [vmem:[%s379 + $0x30] sm:$0xf]
    %v393 = vld [vmem:[%s379 + $0x34] sm:$0xf]
    %v394 = vld [vmem:[%s379 + $0x38] sm:$0xf]
    %v395 = vld [vmem:[%s379 + $0x3c] sm:$0xf]
    %s396 = scalar_lea.vmem %s6, 1
    %v397 = vld [vmem:[%s396] sm:$0x1]
    %v399 = vperm.slane %v397, 0
    %v417 = vunpack.c.l.b16 %v380
    %v418 = vunpack.c.l.b16 %v381
    %v419 = vunpack.c.l.b16 %v382
    %v420 = vunpack.c.l.b16 %v383
    %v421 = vunpack.c.l.b16 %v384
    %v422 = vunpack.c.l.b16 %v385
    %v423 = vunpack.c.l.b16 %v386
    %v424 = vunpack.c.l.b16 %v387
    %v425 = vunpack.c.l.b16 %v388
    %v426 = vunpack.c.l.b16 %v389
    %v427 = vunpack.c.l.b16 %v390
    %v428 = vunpack.c.l.b16 %v391
    %v429 = vunpack.c.l.b16 %v392
    %v430 = vunpack.c.l.b16 %v393
    %v431 = vunpack.c.l.b16 %v394
    %v432 = vunpack.c.l.b16 %v395
    %v433 = vpack.c.b16 %v418, %v417
    %v434 = vpack.c.b16 %v420, %v419
    %v435 = vpack.c.b16 %v422, %v421
    %v436 = vpack.c.b16 %v424, %v423
    %v437 = vpack.c.b16 %v426, %v425
    %v438 = vpack.c.b16 %v428, %v427
    %v439 = vpack.c.b16 %v430, %v429
    %v440 = vpack.c.b16 %v432, %v431
    %449 = vmatpush.bf16.msra.mxu0 %v440
    %450 = vmatpush.bf16.msra.mxu0 %v439
    %451 = vmatpush.bf16.msra.mxu0 %v438
    %452 = vmatpush.bf16.msra.mxu0 %v437
    %453 = vmatpush.bf16.msra.mxu0 %v436
    %454 = vmatpush.bf16.msra.mxu0 %v435
    %455 = vmatpush.bf16.msra.mxu0 %v434
    %456 = vmatpush.bf16.msra.mxu0 %v433
    %457 = vmatmul.bf16.gmra.mxu0 %v378
    %v458 = vpop.f32.mrf.mxu0
    %v459 = vadd.f32 %v399, %v458
    %v460 = vpop.f32.mrf.mxu0
    %v461 = vadd.f32 %v399, %v460
    %462 = vdwg.mxu0
    %v463 = vadd.f32 %v289, %v459
    %v464 = vadd.f32 %v290, %v461
    %v465 = vld [vmem:[%s7] sm:$0x1]
    %v467 = vperm.slane %v465, 0
    %v469 = vmul.f32 %v463, %v467
    %v470 = vmul.f32 %v464, %v467
    %v471 = vld [vmem:[%s8] sm:$0x1]
    %v473 = vperm.slane %v471, 0
    %v475 = vadd.f32 %v469, %v473
    %v476 = vadd.f32 %v470, %v473
    %v477 = vmax.f32 %v475, 0.0
    %v478 = vmax.f32 %v476, 0.0
    %v479 = vpack.c.bf16 %v478, %v477
    %v480 = vld [vmem:[#allocation7] sm:$0xf]
    %v481 = vld [vmem:[#allocation7 + $0x4] sm:$0xf]
    %v482 = vld [vmem:[#allocation7 + $0x8] sm:$0xf]
    %v483 = vld [vmem:[#allocation7 + $0xc] sm:$0xf]
    %v484 = vld [vmem:[#allocation7 + $0x10] sm:$0xf]
    %v485 = vld [vmem:[#allocation7 + $0x14] sm:$0xf]
    %v486 = vld [vmem:[#allocation7 + $0x18] sm:$0xf]
    %v487 = vld [vmem:[#allocation7 + $0x1c] sm:$0xf]
    %v488 = vld [vmem:[#allocation7 + $0x20] sm:$0xf]
    %v489 = vld [vmem:[#allocation7 + $0x24] sm:$0xf]
    %v490 = vld [vmem:[#allocation7 + $0x28] sm:$0xf]
    %v491 = vld [vmem:[#allocation7 + $0x2c] sm:$0xf]
    %v492 = vld [vmem:[#allocation7 + $0x30] sm:$0xf]
    %v493 = vld [vmem:[#allocation7 + $0x34] sm:$0xf]
    %v494 = vld [vmem:[#allocation7 + $0x38] sm:$0xf]
    %v495 = vld [vmem:[#allocation7 + $0x3c] sm:$0xf]
    %v496 = vld [vmem:[%s10] sm:$0x1]
    %v498 = vperm.slane %v496, 0
    %v516 = vunpack.c.l.b16 %v480
    %v517 = vunpack.c.l.b16 %v481
    %v518 = vunpack.c.l.b16 %v482
    %v519 = vunpack.c.l.b16 %v483
    %v520 = vunpack.c.l.b16 %v484
    %v521 = vunpack.c.l.b16 %v485
    %v522 = vunpack.c.l.b16 %v486
    %v523 = vunpack.c.l.b16 %v487
    %v524 = vunpack.c.l.b16 %v488
    %v525 = vunpack.c.l.b16 %v489
    %v526 = vunpack.c.l.b16 %v490
    %v527 = vunpack.c.l.b16 %v491
    %v528 = vunpack.c.l.b16 %v492
    %v529 = vunpack.c.l.b16 %v493
    %v530 = vunpack.c.l.b16 %v494
    %v531 = vunpack.c.l.b16 %v495
    %v532 = vpack.c.b16 %v517, %v516
    %v533 = vpack.c.b16 %v519, %v518
    %v534 = vpack.c.b16 %v521, %v520
    %v535 = vpack.c.b16 %v523, %v522
    %v536 = vpack.c.b16 %v525, %v524
    %v537 = vpack.c.b16 %v527, %v526
    %v538 = vpack.c.b16 %v529, %v528
    %v539 = vpack.c.b16 %v531, %v530
    %548 = vmatpush.bf16.msra.mxu0 %v539
    %549 = vmatpush.bf16.msra.mxu0 %v538
    %550 = vmatpush.bf16.msra.mxu0 %v537
    %551 = vmatpush.bf16.msra.mxu0 %v536
    %552 = vmatpush.bf16.msra.mxu0 %v535
    %553 = vmatpush.bf16.msra.mxu0 %v534
    %554 = vmatpush.bf16.msra.mxu0 %v533
    %555 = vmatpush.bf16.msra.mxu0 %v532
    %556 = vmatmul.bf16.gmra.mxu0 %v479
    %v557 = vpop.f32.mrf.mxu0
    %v558 = vadd.f32 %v498, %v557
    %v559 = vpop.f32.mrf.mxu0
    %v560 = vadd.f32 %v498, %v559
    %561 = vdwg.mxu0
    %562 = vst [vmem:[#allocation8] sm:$0xff] %v558
    %563 = vst [vmem:[#allocation8 + $0x8] sm:$0xff] %v560
    // Predicated region
    $region58: #{tpu_custom_call.1} parent=1 // pred_check
      _
    $region59: #{tpu_custom_call.1} parent=1 // pred_check_branch
      %565 = sbr.rel (0) target = $region61
    $region60: #{tpu_custom_call.1} parent=1 // pred_region
      %567 = vsyncadd [#allocation4], 0
      %s568 = sshll.u32 [#allocation8], 4
      %s569 = int_to_ptr.vmem [resolvable:$true] %s568
      %s570 = sshll.u32 %s11, 4
      %s571 = int_to_ptr.hbm [resolvable:$true] %s570
      %576 = dma.vmem_to_hbm [thread:$0]  %s569, 256, %s571, [#allocation4], 128, 128, 8
    $region61: #{tpu_custom_call.1} parent=1 // pred_fallthru
      _
    // Predicated region
    $region62: #{tpu_custom_call.1} parent=1 // pred_check
      _
    $region63: #{tpu_custom_call.1} parent=1 // pred_check_branch
      %578 = sbr.rel (0) target = $region65
    $region64: #{tpu_custom_call.1} parent=1 // pred_region
      %580 = dma.done [#allocation4], 256
    $region65: #{tpu_custom_call.1} parent=1 // pred_fallthru
      _
    %581 = vsyncpa [#allocation3], 1
    %582 = vsyncpa [#allocation6], 1
    %583 = vsyncpa [#allocation4], 1

</llo_original>
